<compile_context>
chip_gen: v7x
topology: tpu7x:2x2x1
jax: 0.10.0
libtpu: 0.0.40
codegen_flags: <defaults>
</compile_context>

<pallas_src>
import math

import jax
import jax.numpy as jnp
import numpy as np
from jax.experimental import pallas as pl
from jax.experimental.pallas import tpu as pltpu

_NEG_PAD = -1e30  # bias for padded class columns -> exp() == 0 in log_softmax
_LANE = 128


# ----------------------------------------------------------------------------
# Fused Pallas kernel: conv1..conv4 + ReLUs + log_softmax, all in VMEM
# ----------------------------------------------------------------------------
def _gcn4_kernel(adj_ref, x_ref,
                 w1_ref, b1_ref, w2_ref, b2_ref,
                 w3_ref, b3_ref, w4_ref, b4_ref,
                 o_ref):
    adj = adj_ref[...]

    def gcn(h, w_ref, b_ref):
        # project first (smaller second matmul), then aggregate with A_hat
        hw = jnp.dot(h, w_ref[...], preferred_element_type=jnp.float32)
        return jnp.dot(adj, hw, preferred_element_type=jnp.float32) + b_ref[...]

    # dropout is identity at inference
    h = jnp.maximum(gcn(x_ref[...], w1_ref, b1_ref), 0.0)
    h = jnp.maximum(gcn(h, w2_ref, b2_ref), 0.0)
    h = jnp.maximum(gcn(h, w3_ref, b3_ref), 0.0)
    logits = gcn(h, w4_ref, b4_ref)          # [N, C_pad]; pad cols ~= -1e30

    # numerically stable log_softmax along dim=1 (pad columns contribute 0)
    m = jnp.max(logits, axis=1, keepdims=True)
    lse = m + jnp.log(jnp.sum(jnp.exp(logits - m), axis=1, keepdims=True))
    o_ref[...] = logits - lse


def four_layer_gcn_forward(params, x, adj_norm, *, num_classes, lane=_LANE):
    n, f = x.shape
    hidden = params["w1"].shape[1]
    c = params["w4"].shape[1]
    f_pad = -(-f // lane) * lane
    c_pad = -(-max(c, 1) // lane) * lane

    # Host-side lane padding (zero cols of x / zero rows of w1 are a no-op;
    # padded classifier bias = -1e30 so log_softmax ignores the extra columns).
    x_p = jnp.zeros((n, f_pad), jnp.float32).at[:, :f].set(x)
    w1_p = jnp.zeros((f_pad, hidden), jnp.float32).at[:f, :].set(params["w1"])
    w4_p = jnp.zeros((hidden, c_pad), jnp.float32).at[:, :c].set(params["w4"])
    b4_p = jnp.full((1, c_pad), _NEG_PAD, jnp.float32).at[:, :c].set(params["b4"])

    flops = 2 * n * (f_pad * hidden + n * hidden)          # layer 1
    flops += 2 * 2 * n * (hidden * hidden + n * hidden)    # layers 2, 3
    flops += 2 * n * (hidden * c_pad + n * c_pad)          # layer 4
    bytes_accessed = 4 * (adj_norm.size + x_p.size + w1_p.size + w4_p.size
                          + b4_p.size + n * c_pad
                          + sum(params[k].size for k in
                                ("b1", "w2", "b2", "w3", "b3")))

    vmem = pl.BlockSpec(memory_space=pltpu.MemorySpace.VMEM)
    out_padded = pl.pallas_call(
        _gcn4_kernel,
        out_shape=jax.ShapeDtypeStruct((n, c_pad), jnp.float32),
        in_specs=[vmem] * 10,
        out_specs=vmem,
        cost_estimate=pl.CostEstimate(flops=flops,
                                      transcendentals=n * (c_pad + 1),
                                      bytes_accessed=bytes_accessed),
    )(adj_norm, x_p,
      w1_p, params["b1"].reshape(1, -1),
      params["w2"], params["b2"].reshape(1, -1),
      params["w3"], params["b3"].reshape(1, -1),
      w4_p, b4_p)
    return out_padded[:, :num_classes]


# ----------------------------------------------------------------------------
# Pure-jnp reference (same math, no Pallas) for correctness check
# ----------------------------------------------------------------------------
def reference_forward(params, x, adj_norm):
    def gcn(h, w, b):
        return adj_norm @ (h @ w) + b

    h = jnp.maximum(gcn(x, params["w1"], params["b1"]), 0.0)
    h = jnp.maximum(gcn(h, params["w2"], params["b2"]), 0.0)
    h = jnp.maximum(gcn(h, params["w3"], params["b3"]), 0.0)
    logits = gcn(h, params["w4"], params["b4"])
    return jax.nn.log_softmax(logits, axis=1)


# ----------------------------------------------------------------------------
# Deterministic parameters / data
# ----------------------------------------------------------------------------
def _linear_init(key, fan_in, fan_out):
    kw, kb = jax.random.split(key)
    bound = 1.0 / math.sqrt(fan_in)
    w = jax.random.uniform(kw, (fan_in, fan_out), jnp.float32, -bound, bound)
    b = jax.random.uniform(kb, (fan_out,), jnp.float32, -bound, bound)
    return w, b


def make_params(key, num_features, hidden, num_classes):
    k1, k2, k3, k4 = jax.random.split(key, 4)
    w1, b1 = _linear_init(k1, num_features, hidden)
    w2, b2 = _linear_init(k2, hidden, hidden)
    w3, b3 = _linear_init(k3, hidden, hidden)
    w4, b4 = _linear_init(k4, hidden, num_classes)
    return {"w1": w1, "b1": b1, "w2": w2, "b2": b2,
            "w3": w3, "b3": b3, "w4": w4, "b4": b4}


def make_gcn_adjacency(key, num_nodes, num_edges):
    ks, kd = jax.random.split(key)
    src = jax.random.randint(ks, (num_edges,), 0, num_nodes)
    dst = jax.random.randint(kd, (num_edges,), 0, num_nodes)
    a = jnp.zeros((num_nodes, num_nodes), jnp.float32)
    a = a.at[dst, src].set(1.0)
    a = jnp.maximum(a, a.T)                                           # undirected
    a = jnp.minimum(a + jnp.eye(num_nodes, dtype=jnp.float32), 1.0)   # + self loops
    deg = a.sum(axis=1)
    d_inv_sqrt = 1.0 / jnp.sqrt(deg)
    return a * d_inv_sqrt[:, None] * d_inv_sqrt[None, :]


if __name__ == "__main__":
    num_nodes = 128     # lane-dense adjacency (128 x 128)
    num_features = 64   # padded to 128 lanes inside the wrapper
    hidden_dim = 128    # module default; lane-dense intermediates
    num_classes = 8     # padded to 128 lanes inside the wrapper
    num_edges = 256

    key = jax.random.PRNGKey(0)
    key, kx, ke, kp = jax.random.split(key, 4)

    x = jax.random.normal(kx, (num_nodes, num_features), jnp.float32)
    adj_norm = make_gcn_adjacency(ke, num_nodes, num_edges)
    params = make_params(kp, num_features, hidden_dim, num_classes)

    out = four_layer_gcn_forward(params, x, adj_norm, num_classes=num_classes)
    out = jax.block_until_ready(out)

    ref = reference_forward(params, x, adj_norm)
    np.testing.assert_allclose(np.asarray(out), np.asarray(ref),
                               atol=1e-3, rtol=1e-3)
    assert out.shape == (num_nodes, num_classes)

    print("KERNEL_OK")
</pallas_src>

<mosaic_0001>
module attributes {stable_mosaic.version = 11 : i64} {
  func.func @_gcn4_kernel(%arg0: memref<128x128xf32, #tpu.memory_space<vmem>>, %arg1: memref<128x128xf32, #tpu.memory_space<vmem>>, %arg2: memref<128x128xf32, #tpu.memory_space<vmem>>, %arg3: memref<1x128xf32, #tpu.memory_space<vmem>>, %arg4: memref<128x128xf32, #tpu.memory_space<vmem>>, %arg5: memref<1x128xf32, #tpu.memory_space<vmem>>, %arg6: memref<128x128xf32, #tpu.memory_space<vmem>>, %arg7: memref<1x128xf32, #tpu.memory_space<vmem>>, %arg8: memref<128x128xf32, #tpu.memory_space<vmem>>, %arg9: memref<1x128xf32, #tpu.memory_space<vmem>>, %arg10: memref<128x128xf32, #tpu.memory_space<vmem>>) attributes {dimension_semantics = [], scalar_prefetch = 0 : i64, scratch_operands = 0 : i64, tpu.core_type = #tpu.core_type<tc>} {
    %c0 = arith.constant 0 : index
    %c0_0 = arith.constant 0 : index
    %0 = vector.load %arg0[%c0, %c0_0] : memref<128x128xf32, #tpu.memory_space<vmem>>, vector<128x128xf32>
    %c0_1 = arith.constant 0 : index
    %c0_2 = arith.constant 0 : index
    %1 = vector.load %arg1[%c0_1, %c0_2] : memref<128x128xf32, #tpu.memory_space<vmem>>, vector<128x128xf32>
    %c0_3 = arith.constant 0 : index
    %c0_4 = arith.constant 0 : index
    %2 = vector.load %arg2[%c0_3, %c0_4] : memref<128x128xf32, #tpu.memory_space<vmem>>, vector<128x128xf32>
    %cst = arith.constant dense<0.000000e+00> : vector<128x128xf32>
    %3 = tpu.matmul %1, %2, %cst {dimension_numbers = #tpu.dot_dimension_numbers<[1], [0], [0], [1], [0, 0, 1, 1], [], []>} : vector<128x128xf32>, vector<128x128xf32>, vector<128x128xf32> -> vector<128x128xf32>
    %cst_5 = arith.constant dense<0.000000e+00> : vector<128x128xf32>
    %4 = tpu.matmul %0, %3, %cst_5 {dimension_numbers = #tpu.dot_dimension_numbers<[1], [0], [0], [1], [0, 0, 1, 1], [], []>} : vector<128x128xf32>, vector<128x128xf32>, vector<128x128xf32> -> vector<128x128xf32>
    %c0_6 = arith.constant 0 : index
    %c0_7 = arith.constant 0 : index
    %5 = vector.load %arg3[%c0_6, %c0_7] : memref<1x128xf32, #tpu.memory_space<vmem>>, vector<1x128xf32>
    %6 = vector.broadcast %5 : vector<1x128xf32> to vector<128x128xf32>
    %7 = arith.addf %4, %6 : vector<128x128xf32>
    %cst_8 = arith.constant 0.000000e+00 : f32
    %8 = vector.broadcast %cst_8 : f32 to vector<128x128xf32>
    %9 = arith.maximumf %7, %8 : vector<128x128xf32>
    %c0_9 = arith.constant 0 : index
    %c0_10 = arith.constant 0 : index
    %10 = vector.load %arg4[%c0_9, %c0_10] : memref<128x128xf32, #tpu.memory_space<vmem>>, vector<128x128xf32>
    %cst_11 = arith.constant dense<0.000000e+00> : vector<128x128xf32>
    %11 = tpu.matmul %9, %10, %cst_11 {dimension_numbers = #tpu.dot_dimension_numbers<[1], [0], [0], [1], [0, 0, 1, 1], [], []>} : vector<128x128xf32>, vector<128x128xf32>, vector<128x128xf32> -> vector<128x128xf32>
    %cst_12 = arith.constant dense<0.000000e+00> : vector<128x128xf32>
    %12 = tpu.matmul %0, %11, %cst_12 {dimension_numbers = #tpu.dot_dimension_numbers<[1], [0], [0], [1], [0, 0, 1, 1], [], []>} : vector<128x128xf32>, vector<128x128xf32>, vector<128x128xf32> -> vector<128x128xf32>
    %c0_13 = arith.constant 0 : index
    %c0_14 = arith.constant 0 : index
    %13 = vector.load %arg5[%c0_13, %c0_14] : memref<1x128xf32, #tpu.memory_space<vmem>>, vector<1x128xf32>
    %14 = vector.broadcast %13 : vector<1x128xf32> to vector<128x128xf32>
    %15 = arith.addf %12, %14 : vector<128x128xf32>
    %cst_15 = arith.constant 0.000000e+00 : f32
    %16 = vector.broadcast %cst_15 : f32 to vector<128x128xf32>
    %17 = arith.maximumf %15, %16 : vector<128x128xf32>
    %c0_16 = arith.constant 0 : index
    %c0_17 = arith.constant 0 : index
    %18 = vector.load %arg6[%c0_16, %c0_17] : memref<128x128xf32, #tpu.memory_space<vmem>>, vector<128x128xf32>
    %cst_18 = arith.constant dense<0.000000e+00> : vector<128x128xf32>
    %19 = tpu.matmul %17, %18, %cst_18 {dimension_numbers = #tpu.dot_dimension_numbers<[1], [0], [0], [1], [0, 0, 1, 1], [], []>} : vector<128x128xf32>, vector<128x128xf32>, vector<128x128xf32> -> vector<128x128xf32>
    %cst_19 = arith.constant dense<0.000000e+00> : vector<128x128xf32>
    %20 = tpu.matmul %0, %19, %cst_19 {dimension_numbers = #tpu.dot_dimension_numbers<[1], [0], [0], [1], [0, 0, 1, 1], [], []>} : vector<128x128xf32>, vector<128x128xf32>, vector<128x128xf32> -> vector<128x128xf32>
    %c0_20 = arith.constant 0 : index
    %c0_21 = arith.constant 0 : index
    %21 = vector.load %arg7[%c0_20, %c0_21] : memref<1x128xf32, #tpu.memory_space<vmem>>, vector<1x128xf32>
    %22 = vector.broadcast %21 : vector<1x128xf32> to vector<128x128xf32>
    %23 = arith.addf %20, %22 : vector<128x128xf32>
    %cst_22 = arith.constant 0.000000e+00 : f32
    %24 = vector.broadcast %cst_22 : f32 to vector<128x128xf32>
    %25 = arith.maximumf %23, %24 : vector<128x128xf32>
    %c0_23 = arith.constant 0 : index
    %c0_24 = arith.constant 0 : index
    %26 = vector.load %arg8[%c0_23, %c0_24] : memref<128x128xf32, #tpu.memory_space<vmem>>, vector<128x128xf32>
    %cst_25 = arith.constant dense<0.000000e+00> : vector<128x128xf32>
    %27 = tpu.matmul %25, %26, %cst_25 {dimension_numbers = #tpu.dot_dimension_numbers<[1], [0], [0], [1], [0, 0, 1, 1], [], []>} : vector<128x128xf32>, vector<128x128xf32>, vector<128x128xf32> -> vector<128x128xf32>
    %cst_26 = arith.constant dense<0.000000e+00> : vector<128x128xf32>
    %28 = tpu.matmul %0, %27, %cst_26 {dimension_numbers = #tpu.dot_dimension_numbers<[1], [0], [0], [1], [0, 0, 1, 1], [], []>} : vector<128x128xf32>, vector<128x128xf32>, vector<128x128xf32> -> vector<128x128xf32>
    %c0_27 = arith.constant 0 : index
    %c0_28 = arith.constant 0 : index
    %29 = vector.load %arg9[%c0_27, %c0_28] : memref<1x128xf32, #tpu.memory_space<vmem>>, vector<1x128xf32>
    %30 = vector.broadcast %29 : vector<1x128xf32> to vector<128x128xf32>
    %31 = arith.addf %28, %30 : vector<128x128xf32>
    %cst_29 = arith.constant dense<0xFF800000> : vector<128xf32>
    %32 = vector.multi_reduction <maximumf>, %31, %cst_29 [1] : vector<128x128xf32> to vector<128xf32>
    %33 = vector.shape_cast %32 : vector<128xf32> to vector<128x1xf32>
    %34 = vector.broadcast %33 : vector<128x1xf32> to vector<128x128xf32>
    %35 = arith.subf %31, %34 : vector<128x128xf32>
    %36 = math.exp %35 : vector<128x128xf32>
    %cst_30 = arith.constant dense<0.000000e+00> : vector<128xf32>
    %37 = vector.multi_reduction <add>, %36, %cst_30 [1] : vector<128x128xf32> to vector<128xf32>
    %38 = vector.shape_cast %37 : vector<128xf32> to vector<128x1xf32>
    %39 = math.log %38 : vector<128x1xf32>
    %40 = arith.addf %33, %39 : vector<128x1xf32>
    %41 = vector.broadcast %40 : vector<128x1xf32> to vector<128x128xf32>
    %42 = arith.subf %31, %41 : vector<128x128xf32>
    %c0_31 = arith.constant 0 : index
    %c0_32 = arith.constant 0 : index
    %43 = vector.load %arg10[%c0_31, %c0_32] : memref<128x128xf32, #tpu.memory_space<vmem>>, vector<128x128xf32>
    tpu.vector_store %arg10[%c0_31, %c0_32], %42 {strides = array<i32>} : memref<128x128xf32, #tpu.memory_space<vmem>>, vector<128x128xf32>,
    return
  }
}

</mosaic_0001>

<llo_original>
// kernel: tpu_custom_call.1
$region0: #{tpu_custom_call.1}
  #allocation0 [shape = 'u32[]', space=smem, size = 0x4, offset = 0x4, fixed_abs, tag = 'smem constant byte address 0x4 - core index']
  #allocation1 [shape = 'u32[144,128]{1,0:T(1,128)}', space=vmem, size = 0x12000, scoped, tag = 'internal scratch']
  %s0 = inlined_call_operand.hbm [shape: f32[128,128], index: 0, kind: input, shape index: {}]
  %s1 = inlined_call_operand.hbm [shape: f32[128,128], index: 1, kind: input, shape index: {}]
  %s2 = inlined_call_operand.hbm [shape: f32[128,128], index: 2, kind: input, shape index: {}]
  %s3 = inlined_call_operand.vmem [shape: f32[1,128], index: 3, kind: input, shape index: {}]
  %s4 = inlined_call_operand.hbm [shape: f32[128,128], index: 4, kind: input, shape index: {}]
  %s5 = inlined_call_operand.vmem [shape: f32[1,128], index: 5, kind: input, shape index: {}]
  %s6 = inlined_call_operand.hbm [shape: f32[128,128], index: 6, kind: input, shape index: {}]
  %s7 = inlined_call_operand.vmem [shape: f32[1,128], index: 7, kind: input, shape index: {}]
  %s8 = inlined_call_operand.hbm [shape: f32[128,128], index: 8, kind: input, shape index: {}]
  %s9 = inlined_call_operand.vmem [shape: f32[1,128], index: 9, kind: input, shape index: {}]
  %s10 = inlined_call_operand.hbm [shape: f32[128,128], index: 10, kind: output, shape index: {}]
  %s11 = sld [smem:[#allocation0]]
  $region74: #{tpu_custom_call.1} parent=0
    _
  %s13 = ssub.s32 1, %s11
  %s14 = scalar_select 0, %s13, %s11
  $region1: #{tpu_custom_call.1} parent=0
    #allocation2 [shape = 'u8[65536]{0}', space=vmem, size = 0x10000, scoped, tag = 'input window, operand 0, single buffered']
    #allocation3 [shape = 's32[1]{0}', space=sflag, size = 0x4, scoped, tag = 'scoped memory for tpu_custom_call.1']
    #allocation4 [shape = 's32[1]{0}', space=sflag, size = 0x4, scoped, tag = 'scoped memory for tpu_custom_call.1']
    #allocation5 [shape = 'u8[65536]{0}', space=vmem, size = 0x10000, scoped, tag = 'input window, operand 1, single buffered']
    #allocation6 [shape = 's32[1]{0}', space=sflag, size = 0x4, scoped, tag = 'scoped memory for tpu_custom_call.1']
    #allocation7 [shape = 'u8[65536]{0}', space=vmem, size = 0x10000, scoped, tag = 'input window, operand 2, single buffered']
    #allocation8 [shape = 'u8[65536]{0}', space=vmem, size = 0x10000, scoped, tag = 'input window, operand 4, single buffered']
    #allocation9 [shape = 's32[1]{0}', space=sflag, size = 0x4, scoped, tag = 'scoped memory for tpu_custom_call.1']
    #allocation10 [shape = 'u8[65536]{0}', space=vmem, size = 0x10000, scoped, tag = 'input window, operand 6, single buffered']
    #allocation11 [shape = 'u8[65536]{0}', space=vmem, size = 0x10000, scoped, tag = 'input window, operand 8, single buffered']
    #allocation12 [shape = 's32[1]{0}', space=sflag, size = 0x4, scoped, tag = 'scoped memory for tpu_custom_call.1']
    #allocation13 [shape = 'u8[65536]{0}', space=vmem, size = 0x10000, scoped, tag = 'output window, operand 0, single buffered']
    %15 = vsyncpa [#allocation3], 0
    %16 = vsyncpa [#allocation6], 0
    %17 = vsyncpa [#allocation9], 0
    %18 = vsyncpa [#allocation12], 0
    %19 = vsyncpa [#allocation4], 0
    // Predicated region
    $region2: #{tpu_custom_call.1} parent=1 // pred_check
      _
    $region3: #{tpu_custom_call.1} parent=1 // pred_check_branch
      %21 = sbr.rel (0) target = $region5
    $region4: #{tpu_custom_call.1} parent=1 // pred_region
      %s23 = ssub.s32 2048, 2048
      %24 = vsyncadd [#allocation3], %s23
      %s25 = sshll.u32 [#allocation2], 4
      %s26 = int_to_ptr.vmem [resolvable:$true] %s25
      %31 = dma.hbm_to_vmem [thread:$0]  %s0, 2048, %s26, [#allocation3], 128, 128, 8
    $region5: #{tpu_custom_call.1} parent=1 // pred_fallthru
      _
    // Predicated region
    $region6: #{tpu_custom_call.1} parent=1 // pred_check
      _
    $region7: #{tpu_custom_call.1} parent=1 // pred_check_branch
      %33 = sbr.rel (0) target = $region9
    $region8: #{tpu_custom_call.1} parent=1 // pred_region
      %s35 = ssub.s32 2048, 2048
      %36 = vsyncadd [#allocation6], %s35
      %s37 = sshll.u32 [#allocation5], 4
      %s38 = int_to_ptr.vmem [resolvable:$true] %s37
      %43 = dma.hbm_to_vmem [thread:$0]  %s1, 2048, %s38, [#allocation6], 128, 128, 8
    $region9: #{tpu_custom_call.1} parent=1 // pred_fallthru
      _
    // Predicated region
    $region10: #{tpu_custom_call.1} parent=1 // pred_check
      _
    $region11: #{tpu_custom_call.1} parent=1 // pred_check_branch
      %45 = sbr.rel (0) target = $region13
    $region12: #{tpu_custom_call.1} parent=1 // pred_region
      %s47 = ssub.s32 2048, 2048
      %48 = vsyncadd [#allocation6], %s47
      %s49 = sshll.u32 [#allocation7], 4
      %s50 = int_to_ptr.vmem [resolvable:$true] %s49
      %55 = dma.hbm_to_vmem [thread:$0]  %s2, 2048, %s50, [#allocation6], 128, 128, 8
    $region13: #{tpu_custom_call.1} parent=1 // pred_fallthru
      _
    // Predicated region
    $region14: #{tpu_custom_call.1} parent=1 // pred_check
      _
    $region15: #{tpu_custom_call.1} parent=1 // pred_check_branch
      %57 = sbr.rel (0) target = $region17
    $region16: #{tpu_custom_call.1} parent=1 // pred_region
      _
    $region17: #{tpu_custom_call.1} parent=1 // pred_fallthru
      _
    // Predicated region
    $region18: #{tpu_custom_call.1} parent=1 // pred_check
      _
    $region19: #{tpu_custom_call.1} parent=1 // pred_check_branch
      %59 = sbr.rel (0) target = $region21
    $region20: #{tpu_custom_call.1} parent=1 // pred_region
      %s61 = ssub.s32 2048, 2048
      %62 = vsyncadd [#allocation9], %s61
      %s63 = sshll.u32 [#allocation8], 4
      %s64 = int_to_ptr.vmem [resolvable:$true] %s63
      %69 = dma.hbm_to_vmem [thread:$0]  %s4, 2048, %s64, [#allocation9], 128, 128, 8
    $region21: #{tpu_custom_call.1} parent=1 // pred_fallthru
      _
    // Predicated region
    $region22: #{tpu_custom_call.1} parent=1 // pred_check
      _
    $region23: #{tpu_custom_call.1} parent=1 // pred_check_branch
      %71 = sbr.rel (0) target = $region25
    $region24: #{tpu_custom_call.1} parent=1 // pred_region
      _
    $region25: #{tpu_custom_call.1} parent=1 // pred_fallthru
      _
    // Predicated region
    $region26: #{tpu_custom_call.1} parent=1 // pred_check
      _
    $region27: #{tpu_custom_call.1} parent=1 // pred_check_branch
      %73 = sbr.rel (0) target = $region29
    $region28: #{tpu_custom_call.1} parent=1 // pred_region
      %s75 = ssub.s32 2048, 2048
      %76 = vsyncadd [#allocation9], %s75
      %s77 = sshll.u32 [#allocation10], 4
      %s78 = int_to_ptr.vmem [resolvable:$true] %s77
      %83 = dma.hbm_to_vmem [thread:$0]  %s6, 2048, %s78, [#allocation9], 128, 128, 8
    $region29: #{tpu_custom_call.1} parent=1 // pred_fallthru
      _
    // Predicated region
    $region30: #{tpu_custom_call.1} parent=1 // pred_check
      _
    $region31: #{tpu_custom_call.1} parent=1 // pred_check_branch
      %85 = sbr.rel (0) target = $region33
    $region32: #{tpu_custom_call.1} parent=1 // pred_region
      _
    $region33: #{tpu_custom_call.1} parent=1 // pred_fallthru
      _
    // Predicated region
    $region34: #{tpu_custom_call.1} parent=1 // pred_check
      _
    $region35: #{tpu_custom_call.1} parent=1 // pred_check_branch
      %87 = sbr.rel (0) target = $region37
    $region36: #{tpu_custom_call.1} parent=1 // pred_region
      %s89 = ssub.s32 2048, 2048
      %90 = vsyncadd [#allocation12], %s89
      %s91 = sshll.u32 [#allocation11], 4
      %s92 = int_to_ptr.vmem [resolvable:$true] %s91
      %97 = dma.hbm_to_vmem [thread:$0]  %s8, 2048, %s92, [#allocation12], 128, 128, 8
    $region37: #{tpu_custom_call.1} parent=1 // pred_fallthru
      _
    // Predicated region
    $region38: #{tpu_custom_call.1} parent=1 // pred_check
      _
    $region39: #{tpu_custom_call.1} parent=1 // pred_check_branch
      %99 = sbr.rel (0) target = $region41
    $region40: #{tpu_custom_call.1} parent=1 // pred_region
      _
    $region41: #{tpu_custom_call.1} parent=1 // pred_fallthru
      _
    // Predicated region
    $region42: #{tpu_custom_call.1} parent=1 // pred_check
      _
    $region43: #{tpu_custom_call.1} parent=1 // pred_check_branch
      %101 = sbr.rel (0) target = $region45
    $region44: #{tpu_custom_call.1} parent=1 // pred_region
      %102 = dma.done [#allocation3], 2048
    $region45: #{tpu_custom_call.1} parent=1 // pred_fallthru
      _
    // Predicated region
    $region46: #{tpu_custom_call.1} parent=1 // pred_check
      _
    $region47: #{tpu_custom_call.1} parent=1 // pred_check_branch
      %104 = sbr.rel (0) target = $region49
    $region48: #{tpu_custom_call.1} parent=1 // pred_region
      %105 = dma.done [#allocation6], 2048
    $region49: #{tpu_custom_call.1} parent=1 // pred_fallthru
      _
    // Predicated region
    $region50: #{tpu_custom_call.1} parent=1 // pred_check
      _
    $region51: #{tpu_custom_call.1} parent=1 // pred_check_branch
      %107 = sbr.rel (0) target = $region53
    $region52: #{tpu_custom_call.1} parent=1 // pred_region
      %108 = dma.done [#allocation6], 2048
    $region53: #{tpu_custom_call.1} parent=1 // pred_fallthru
      _
    // Predicated region
    $region54: #{tpu_custom_call.1} parent=1 // pred_check
      _
    $region55: #{tpu_custom_call.1} parent=1 // pred_check_branch
      %110 = sbr.rel (0) target = $region57
    $region56: #{tpu_custom_call.1} parent=1 // pred_region
      %111 = dma.done [#allocation9], 2048
    $region57: #{tpu_custom_call.1} parent=1 // pred_fallthru
      _
    // Predicated region
    $region58: #{tpu_custom_call.1} parent=1 // pred_check
      _
    $region59: #{tpu_custom_call.1} parent=1 // pred_check_branch
      %113 = sbr.rel (0) target = $region61
    $region60: #{tpu_custom_call.1} parent=1 // pred_region
      %114 = dma.done [#allocation9], 2048
    $region61: #{tpu_custom_call.1} parent=1 // pred_fallthru
      _
    // Predicated region
    $region62: #{tpu_custom_call.1} parent=1 // pred_check
      _
    $region63: #{tpu_custom_call.1} parent=1 // pred_check_branch
      %116 = sbr.rel (0) target = $region65
    $region64: #{tpu_custom_call.1} parent=1 // pred_region
      %117 = dma.done [#allocation12], 2048
    $region65: #{tpu_custom_call.1} parent=1 // pred_fallthru
      _
    %v118 = vld [vmem:[#allocation2] sm:$0xff]
    %v119 = vld [vmem:[#allocation2 + $0x8] sm:$0xff]
    %v120 = vld [vmem:[#allocation2 + $0x10] sm:$0xff]
    %v121 = vld [vmem:[#allocation2 + $0x18] sm:$0xff]
    %v122 = vld [vmem:[#allocation2 + $0x20] sm:$0xff]
    %v123 = vld [vmem:[#allocation2 + $0x28] sm:$0xff]
    %v124 = vld [vmem:[#allocation2 + $0x30] sm:$0xff]
    %v125 = vld [vmem:[#allocation2 + $0x38] sm:$0xff]
    %v126 = vld [vmem:[#allocation2 + $0x40] sm:$0xff]
    %v127 = vld [vmem:[#allocation2 + $0x48] sm:$0xff]
    %v128 = vld [vmem:[#allocation2 + $0x50] sm:$0xff]
    %v129 = vld [vmem:[#allocation2 + $0x58] sm:$0xff]
    %v130 = vld [vmem:[#allocation2 + $0x60] sm:$0xff]
    %v131 = vld [vmem:[#allocation2 + $0x68] sm:$0xff]
    %v132 = vld [vmem:[#allocation2 + $0x70] sm:$0xff]
    %v133 = vld [vmem:[#allocation2 + $0x78] sm:$0xff]
    %v134 = vld [vmem:[#allocation5] sm:$0xff]
    %v135 = vld [vmem:[#allocation5 + $0x8] sm:$0xff]
    %v136 = vld [vmem:[#allocation5 + $0x10] sm:$0xff]
    %v137 = vld [vmem:[#allocation5 + $0x18] sm:$0xff]
    %v138 = vld [vmem:[#allocation5 + $0x20] sm:$0xff]
    %v139 = vld [vmem:[#allocation5 + $0x28] sm:$0xff]
    %v140 = vld [vmem:[#allocation5 + $0x30] sm:$0xff]
    %v141 = vld [vmem:[#allocation5 + $0x38] sm:$0xff]
    %v142 = vld [vmem:[#allocation5 + $0x40] sm:$0xff]
    %v143 = vld [vmem:[#allocation5 + $0x48] sm:$0xff]
    %v144 = vld [vmem:[#allocation5 + $0x50] sm:$0xff]
    %v145 = vld [vmem:[#allocation5 + $0x58] sm:$0xff]
    %v146 = vld [vmem:[#allocation5 + $0x60] sm:$0xff]
    %v147 = vld [vmem:[#allocation5 + $0x68] sm:$0xff]
    %v148 = vld [vmem:[#allocation5 + $0x70] sm:$0xff]
    %v149 = vld [vmem:[#allocation5 + $0x78] sm:$0xff]
    %v150 = vld [vmem:[#allocation7] sm:$0xff]
    %v151 = vld [vmem:[#allocation7 + $0x8] sm:$0xff]
    %v152 = vld [vmem:[#allocation7 + $0x10] sm:$0xff]
    %v153 = vld [vmem:[#allocation7 + $0x18] sm:$0xff]
    %v154 = vld [vmem:[#allocation7 + $0x20] sm:$0xff]
    %v155 = vld [vmem:[#allocation7 + $0x28] sm:$0xff]
    %v156 = vld [vmem:[#allocation7 + $0x30] sm:$0xff]
    %v157 = vld [vmem:[#allocation7 + $0x38] sm:$0xff]
    %v158 = vld [vmem:[#allocation7 + $0x40] sm:$0xff]
    %v159 = vld [vmem:[#allocation7 + $0x48] sm:$0xff]
    %v160 = vld [vmem:[#allocation7 + $0x50] sm:$0xff]
    %v161 = vld [vmem:[#allocation7 + $0x58] sm:$0xff]
    %v162 = vld [vmem:[#allocation7 + $0x60] sm:$0xff]
    %v163 = vld [vmem:[#allocation7 + $0x68] sm:$0xff]
    %v164 = vld [vmem:[#allocation7 + $0x70] sm:$0xff]
    %v165 = vld [vmem:[#allocation7 + $0x78] sm:$0xff]
    %166 = vmatprep.subr.mxu0 0.0
    %167 = vmatpush1.msra.mxu0 %v150
    %168 = vmatprep.subr.mxu0 0.0
    %169 = vmatpush1.msra.mxu0 %v151
    %170 = vmatprep.subr.mxu0 0.0
    %171 = vmatpush1.msra.mxu0 %v152
    %172 = vmatprep.subr.mxu0 0.0
    %173 = vmatpush1.msra.mxu0 %v153
    %174 = vmatprep.subr.mxu0 0.0
    %175 = vmatpush1.msra.mxu0 %v154
    %176 = vmatprep.subr.mxu0 0.0
    %177 = vmatpush1.msra.mxu0 %v155
    %178 = vmatprep.subr.mxu0 0.0
    %179 = vmatpush1.msra.mxu0 %v156
    %180 = vmatprep.subr.mxu0 0.0
    %181 = vmatpush1.msra.mxu0 %v157
    %182 = vmatprep.subr.mxu0 0.0
    %183 = vmatpush1.msra.mxu0 %v158
    %184 = vmatprep.subr.mxu0 0.0
    %185 = vmatpush1.msra.mxu0 %v159
    %186 = vmatprep.subr.mxu0 0.0
    %187 = vmatpush1.msra.mxu0 %v160
    %188 = vmatprep.subr.mxu0 0.0
    %189 = vmatpush1.msra.mxu0 %v161
    %190 = vmatprep.subr.mxu0 0.0
    %191 = vmatpush1.msra.mxu0 %v162
    %192 = vmatprep.subr.mxu0 0.0
    %193 = vmatpush1.msra.mxu0 %v163
    %194 = vmatprep.subr.mxu0 0.0
    %195 = vmatpush1.msra.mxu0 %v164
    %196 = vmatprep.subr.mxu0 0.0
    %197 = vmatpush1.msra.mxu0 %v165
    %198 = vmatprep.subr.mxu0 0.0
    %199 = vmatpush1.msra.mxu0 0.0
    %200 = vmatprep.subr.mxu0 0.0
    %201 = vmatpush1.msra.mxu0 0.0
    %202 = vmatprep.subr.mxu0 0.0
    %203 = vmatpush1.msra.mxu0 0.0
    %204 = vmatprep.subr.mxu0 0.0
    %205 = vmatpush1.msra.mxu0 0.0
    %206 = vmatprep.subr.mxu0 0.0
    %207 = vmatpush1.msra.mxu0 0.0
    %208 = vmatprep.subr.mxu0 0.0
    %209 = vmatpush1.msra.mxu0 0.0
    %210 = vmatprep.subr.mxu0 0.0
    %211 = vmatpush1.msra.mxu0 0.0
    %212 = vmatprep.subr.mxu0 0.0
    %213 = vmatpush1.msra.mxu0 0.0
    %214 = vmatprep.subr.mxu0 0.0
    %215 = vmatpush1.msra.mxu0 0.0
    %216 = vmatprep.subr.mxu0 0.0
    %217 = vmatpush1.msra.mxu0 0.0
    %218 = vmatprep.subr.mxu0 0.0
    %219 = vmatpush1.msra.mxu0 0.0
    %220 = vmatprep.subr.mxu0 0.0
    %221 = vmatpush1.msra.mxu0 0.0
    %222 = vmatprep.subr.mxu0 0.0
    %223 = vmatpush1.msra.mxu0 0.0
    %224 = vmatprep.subr.mxu0 0.0
    %225 = vmatpush1.msra.mxu0 0.0
    %226 = vmatprep.subr.mxu0 0.0
    %227 = vmatpush1.msra.mxu0 0.0
    %228 = vmatprep.subr.mxu0 0.0
    %229 = vmatpush1.msra.mxu0 0.0
    %230 = vmatprep.mubr.f32.mxu0 0.0
    %231 = vmatmul.mubr.f32.gmra.mrb[0].mxu0 %v134
    %v232 = vpop.f32.mrb[0].mxu0
    %v233 = vadd.f32 0.0, %v232
    %v234 = vpop.f32.mrb[0].mxu0
    %235 = vmatprep.mubr.f32.mxu0 0.0
    %236 = vmatmul.mubr.f32.gmra.mrb[0].mxu0 %v135
    %v237 = vpop.f32.mrb[0].mxu0
    %v238 = vadd.f32 0.0, %v237
    %v239 = vpop.f32.mrb[0].mxu0
    %240 = vmatprep.mubr.f32.mxu0 0.0
    %241 = vmatmul.mubr.f32.gmra.mrb[0].mxu0 %v136
    %v242 = vpop.f32.mrb[0].mxu0
    %v243 = vadd.f32 0.0, %v242
    %v244 = vpop.f32.mrb[0].mxu0
    %245 = vmatprep.mubr.f32.mxu0 0.0
    %246 = vmatmul.mubr.f32.gmra.mrb[0].mxu0 %v137
    %v247 = vpop.f32.mrb[0].mxu0
    %v248 = vadd.f32 0.0, %v247
    %v249 = vpop.f32.mrb[0].mxu0
    %250 = vmatprep.mubr.f32.mxu0 0.0
    %251 = vmatmul.mubr.f32.gmra.mrb[0].mxu0 %v138
    %v252 = vpop.f32.mrb[0].mxu0
    %v253 = vadd.f32 0.0, %v252
    %v254 = vpop.f32.mrb[0].mxu0
    %255 = vmatprep.mubr.f32.mxu0 0.0
    %256 = vmatmul.mubr.f32.gmra.mrb[0].mxu0 %v139
    %v257 = vpop.f32.mrb[0].mxu0
    %v258 = vadd.f32 0.0, %v257
    %v259 = vpop.f32.mrb[0].mxu0
    %260 = vmatprep.mubr.f32.mxu0 0.0
    %261 = vmatmul.mubr.f32.gmra.mrb[0].mxu0 %v140
    %v262 = vpop.f32.mrb[0].mxu0
    %v263 = vadd.f32 0.0, %v262
    %v264 = vpop.f32.mrb[0].mxu0
    %265 = vmatprep.mubr.f32.mxu0 0.0
    %266 = vmatmul.mubr.f32.gmra.mrb[0].mxu0 %v141
    %v267 = vpop.f32.mrb[0].mxu0
    %v268 = vadd.f32 0.0, %v267
    %v269 = vpop.f32.mrb[0].mxu0
    %270 = vmatprep.mubr.f32.mxu0 0.0
    %271 = vmatmul.mubr.f32.gmra.mrb[0].mxu0 %v142
    %v272 = vpop.f32.mrb[0].mxu0
    %v273 = vadd.f32 0.0, %v272
    %v274 = vpop.f32.mrb[0].mxu0
    %275 = vmatprep.mubr.f32.mxu0 0.0
    %276 = vmatmul.mubr.f32.gmra.mrb[0].mxu0 %v143
    %v277 = vpop.f32.mrb[0].mxu0
    %v278 = vadd.f32 0.0, %v277
    %v279 = vpop.f32.mrb[0].mxu0
    %280 = vmatprep.mubr.f32.mxu0 0.0
    %281 = vmatmul.mubr.f32.gmra.mrb[0].mxu0 %v144
    %v282 = vpop.f32.mrb[0].mxu0
    %v283 = vadd.f32 0.0, %v282
    %v284 = vpop.f32.mrb[0].mxu0
    %285 = vmatprep.mubr.f32.mxu0 0.0
    %286 = vmatmul.mubr.f32.gmra.mrb[0].mxu0 %v145
    %v287 = vpop.f32.mrb[0].mxu0
    %v288 = vadd.f32 0.0, %v287
    %v289 = vpop.f32.mrb[0].mxu0
    %290 = vmatprep.mubr.f32.mxu0 0.0
    %291 = vmatmul.mubr.f32.gmra.mrb[0].mxu0 %v146
    %v292 = vpop.f32.mrb[0].mxu0
    %v293 = vadd.f32 0.0, %v292
    %v294 = vpop.f32.mrb[0].mxu0
    %295 = vmatprep.mubr.f32.mxu0 0.0
    %296 = vmatmul.mubr.f32.gmra.mrb[0].mxu0 %v147
    %v297 = vpop.f32.mrb[0].mxu0
    %v298 = vadd.f32 0.0, %v297
    %v299 = vpop.f32.mrb[0].mxu0
    %300 = vmatprep.mubr.f32.mxu0 0.0
    %301 = vmatmul.mubr.f32.gmra.mrb[0].mxu0 %v148
    %v302 = vpop.f32.mrb[0].mxu0
    %v303 = vadd.f32 0.0, %v302
    %v304 = vpop.f32.mrb[0].mxu0
    %305 = vmatprep.mubr.f32.mxu0 0.0
    %306 = vmatmul.mubr.f32.gmra.mrb[0].mxu0 %v149
    %v307 = vpop.f32.mrb[0].mxu0
    %v308 = vadd.f32 0.0, %v307
    %v309 = vpop.f32.mrb[0].mxu0
    %310 = vdwg.mxu0
    %v311 = vld [vmem:[%s3] sm:$0x1]
    %v313 = vlaneseq
    %v314 = vshrl.u32 %v313, 7
    %v315 = vsub.s32 0, %v314
    %v316 = vrot.slane %v311, %v315
    %318 = vmatprep.subr.mxu0 0.0
    %319 = vmatpush1.msra.mxu0 %v233
    %320 = vmatprep.subr.mxu0 0.0
    %321 = vmatpush1.msra.mxu0 %v238
    %322 = vmatprep.subr.mxu0 0.0
    %323 = vmatpush1.msra.mxu0 %v243
    %324 = vmatprep.subr.mxu0 0.0
    %325 = vmatpush1.msra.mxu0 %v248
    %326 = vmatprep.subr.mxu0 0.0
    %327 = vmatpush1.msra.mxu0 %v253
    %328 = vmatprep.subr.mxu0 0.0
    %329 = vmatpush1.msra.mxu0 %v258
    %330 = vmatprep.subr.mxu0 0.0
    %331 = vmatpush1.msra.mxu0 %v263
    %332 = vmatprep.subr.mxu0 0.0
    %333 = vmatpush1.msra.mxu0 %v268
    %334 = vmatprep.subr.mxu0 0.0
    %335 = vmatpush1.msra.mxu0 %v273
    %336 = vmatprep.subr.mxu0 0.0
    %337 = vmatpush1.msra.mxu0 %v278
    %338 = vmatprep.subr.mxu0 0.0
    %339 = vmatpush1.msra.mxu0 %v283
    %340 = vmatprep.subr.mxu0 0.0
    %341 = vmatpush1.msra.mxu0 %v288
    %342 = vmatprep.subr.mxu0 0.0
    %343 = vmatpush1.msra.mxu0 %v293
    %344 = vmatprep.subr.mxu0 0.0
    %345 = vmatpush1.msra.mxu0 %v298
    %346 = vmatprep.subr.mxu0 0.0
    %347 = vmatpush1.msra.mxu0 %v303
    %348 = vmatprep.subr.mxu0 0.0
    %349 = vmatpush1.msra.mxu0 %v308
    %350 = vmatprep.subr.mxu0 0.0
    %351 = vmatpush1.msra.mxu0 0.0
    %352 = vmatprep.subr.mxu0 0.0
    %353 = vmatpush1.msra.mxu0 0.0
    %354 = vmatprep.subr.mxu0 0.0
    %355 = vmatpush1.msra.mxu0 0.0
    %356 = vmatprep.subr.mxu0 0.0
    %357 = vmatpush1.msra.mxu0 0.0
    %358 = vmatprep.subr.mxu0 0.0
    %359 = vmatpush1.msra.mxu0 0.0
    %360 = vmatprep.subr.mxu0 0.0
    %361 = vmatpush1.msra.mxu0 0.0
    %362 = vmatprep.subr.mxu0 0.0
    %363 = vmatpush1.msra.mxu0 0.0
    %364 = vmatprep.subr.mxu0 0.0
    %365 = vmatpush1.msra.mxu0 0.0
    %366 = vmatprep.subr.mxu0 0.0
    %367 = vmatpush1.msra.mxu0 0.0
    %368 = vmatprep.subr.mxu0 0.0
    %369 = vmatpush1.msra.mxu0 0.0
    %370 = vmatprep.subr.mxu0 0.0
    %371 = vmatpush1.msra.mxu0 0.0
    %372 = vmatprep.subr.mxu0 0.0
    %373 = vmatpush1.msra.mxu0 0.0
    %374 = vmatprep.subr.mxu0 0.0
    %375 = vmatpush1.msra.mxu0 0.0
    %376 = vmatprep.subr.mxu0 0.0
    %377 = vmatpush1.msra.mxu0 0.0
    %378 = vmatprep.subr.mxu0 0.0
    %379 = vmatpush1.msra.mxu0 0.0
    %380 = vmatprep.subr.mxu0 0.0
    %381 = vmatpush1.msra.mxu0 0.0
    %382 = vmatprep.mubr.f32.mxu0 0.0
    %383 = vmatmul.mubr.f32.gmra.mrb[0].mxu0 %v118
    %v384 = vpop.f32.mrb[0].mxu0
    %v385 = vadd.f32 %v316, %v384
    %v386 = vpop.f32.mrb[0].mxu0
    %387 = vmatprep.mubr.f32.mxu0 0.0
    %388 = vmatmul.mubr.f32.gmra.mrb[0].mxu0 %v119
    %v389 = vpop.f32.mrb[0].mxu0
    %v390 = vadd.f32 %v316, %v389
    %v391 = vpop.f32.mrb[0].mxu0
    %392 = vmatprep.mubr.f32.mxu0 0.0
    %393 = vmatmul.mubr.f32.gmra.mrb[0].mxu0 %v120
    %v394 = vpop.f32.mrb[0].mxu0
    %v395 = vadd.f32 %v316, %v394
    %v396 = vpop.f32.mrb[0].mxu0
    %397 = vmatprep.mubr.f32.mxu0 0.0
    %398 = vmatmul.mubr.f32.gmra.mrb[0].mxu0 %v121
    %v399 = vpop.f32.mrb[0].mxu0
    %v400 = vadd.f32 %v316, %v399
    %v401 = vpop.f32.mrb[0].mxu0
    %402 = vmatprep.mubr.f32.mxu0 0.0
    %403 = vmatmul.mubr.f32.gmra.mrb[0].mxu0 %v122
    %v404 = vpop.f32.mrb[0].mxu0
    %v405 = vadd.f32 %v316, %v404
    %v406 = vpop.f32.mrb[0].mxu0
    %407 = vmatprep.mubr.f32.mxu0 0.0
    %408 = vmatmul.mubr.f32.gmra.mrb[0].mxu0 %v123
    %v409 = vpop.f32.mrb[0].mxu0
    %v410 = vadd.f32 %v316, %v409
    %v411 = vpop.f32.mrb[0].mxu0
    %412 = vmatprep.mubr.f32.mxu0 0.0
    %413 = vmatmul.mubr.f32.gmra.mrb[0].mxu0 %v124
    %v414 = vpop.f32.mrb[0].mxu0
    %v415 = vadd.f32 %v316, %v414
    %v416 = vpop.f32.mrb[0].mxu0
    %417 = vmatprep.mubr.f32.mxu0 0.0
    %418 = vmatmul.mubr.f32.gmra.mrb[0].mxu0 %v125
    %v419 = vpop.f32.mrb[0].mxu0
    %v420 = vadd.f32 %v316, %v419
    %v421 = vpop.f32.mrb[0].mxu0
    %422 = vmatprep.mubr.f32.mxu0 0.0
    %423 = vmatmul.mubr.f32.gmra.mrb[0].mxu0 %v126
    %v424 = vpop.f32.mrb[0].mxu0
    %v425 = vadd.f32 %v316, %v424
    %v426 = vpop.f32.mrb[0].mxu0
    %427 = vmatprep.mubr.f32.mxu0 0.0
    %428 = vmatmul.mubr.f32.gmra.mrb[0].mxu0 %v127
    %v429 = vpop.f32.mrb[0].mxu0
    %v430 = vadd.f32 %v316, %v429
    %v431 = vpop.f32.mrb[0].mxu0
    %432 = vmatprep.mubr.f32.mxu0 0.0
    %433 = vmatmul.mubr.f32.gmra.mrb[0].mxu0 %v128
    %v434 = vpop.f32.mrb[0].mxu0
    %v435 = vadd.f32 %v316, %v434
    %v436 = vpop.f32.mrb[0].mxu0
    %437 = vmatprep.mubr.f32.mxu0 0.0
    %438 = vmatmul.mubr.f32.gmra.mrb[0].mxu0 %v129
    %v439 = vpop.f32.mrb[0].mxu0
    %v440 = vadd.f32 %v316, %v439
    %v441 = vpop.f32.mrb[0].mxu0
    %442 = vmatprep.mubr.f32.mxu0 0.0
    %443 = vmatmul.mubr.f32.gmra.mrb[0].mxu0 %v130
    %v444 = vpop.f32.mrb[0].mxu0
    %v445 = vadd.f32 %v316, %v444
    %v446 = vpop.f32.mrb[0].mxu0
    %447 = vmatprep.mubr.f32.mxu0 0.0
    %448 = vmatmul.mubr.f32.gmra.mrb[0].mxu0 %v131
    %v449 = vpop.f32.mrb[0].mxu0
    %v450 = vadd.f32 %v316, %v449
    %v451 = vpop.f32.mrb[0].mxu0
    %452 = vmatprep.mubr.f32.mxu0 0.0
    %453 = vmatmul.mubr.f32.gmra.mrb[0].mxu0 %v132
    %v454 = vpop.f32.mrb[0].mxu0
    %v455 = vadd.f32 %v316, %v454
    %v456 = vpop.f32.mrb[0].mxu0
    %457 = vmatprep.mubr.f32.mxu0 0.0
    %458 = vmatmul.mubr.f32.gmra.mrb[0].mxu0 %v133
    %v459 = vpop.f32.mrb[0].mxu0
    %v460 = vadd.f32 %v316, %v459
    %v461 = vpop.f32.mrb[0].mxu0
    %462 = vdwg.mxu0
    %v463 = vmax.f32 %v385, 0.0
    %v464 = vmax.f32 %v390, 0.0
    %v465 = vmax.f32 %v395, 0.0
    %v466 = vmax.f32 %v400, 0.0
    %v467 = vmax.f32 %v405, 0.0
    %v468 = vmax.f32 %v410, 0.0
    %v469 = vmax.f32 %v415, 0.0
    %v470 = vmax.f32 %v420, 0.0
    %v471 = vmax.f32 %v425, 0.0
    %v472 = vmax.f32 %v430, 0.0
    %v473 = vmax.f32 %v435, 0.0
    %v474 = vmax.f32 %v440, 0.0
    %v475 = vmax.f32 %v445, 0.0
    %v476 = vmax.f32 %v450, 0.0
    %v477 = vmax.f32 %v455, 0.0
    %v478 = vmax.f32 %v460, 0.0
    %v479 = vld [vmem:[#allocation8] sm:$0xff]
    %v480 = vld [vmem:[#allocation8 + $0x8] sm:$0xff]
    %v481 = vld [vmem:[#allocation8 + $0x10] sm:$0xff]
    %v482 = vld [vmem:[#allocation8 + $0x18] sm:$0xff]
    %v483 = vld [vmem:[#allocation8 + $0x20] sm:$0xff]
    %v484 = vld [vmem:[#allocation8 + $0x28] sm:$0xff]
    %v485 = vld [vmem:[#allocation8 + $0x30] sm:$0xff]
    %v486 = vld [vmem:[#allocation8 + $0x38] sm:$0xff]
    %v487 = vld [vmem:[#allocation8 + $0x40] sm:$0xff]
    %v488 = vld [vmem:[#allocation8 + $0x48] sm:$0xff]
    %v489 = vld [vmem:[#allocation8 + $0x50] sm:$0xff]
    %v490 = vld [vmem:[#allocation8 + $0x58] sm:$0xff]
    %v491 = vld [vmem:[#allocation8 + $0x60] sm:$0xff]
    %v492 = vld [vmem:[#allocation8 + $0x68] sm:$0xff]
    %v493 = vld [vmem:[#allocation8 + $0x70] sm:$0xff]
    %v494 = vld [vmem:[#allocation8 + $0x78] sm:$0xff]
    %495 = vmatprep.subr.mxu0 0.0
    %496 = vmatpush1.msra.mxu0 %v479
    %497 = vmatprep.subr.mxu0 0.0
    %498 = vmatpush1.msra.mxu0 %v480
    %499 = vmatprep.subr.mxu0 0.0
    %500 = vmatpush1.msra.mxu0 %v481
    %501 = vmatprep.subr.mxu0 0.0
    %502 = vmatpush1.msra.mxu0 %v482
    %503 = vmatprep.subr.mxu0 0.0
    %504 = vmatpush1.msra.mxu0 %v483
    %505 = vmatprep.subr.mxu0 0.0
    %506 = vmatpush1.msra.mxu0 %v484
    %507 = vmatprep.subr.mxu0 0.0
    %508 = vmatpush1.msra.mxu0 %v485
    %509 = vmatprep.subr.mxu0 0.0
    %510 = vmatpush1.msra.mxu0 %v486
    %511 = vmatprep.subr.mxu0 0.0
    %512 = vmatpush1.msra.mxu0 %v487
    %513 = vmatprep.subr.mxu0 0.0
    %514 = vmatpush1.msra.mxu0 %v488
    %515 = vmatprep.subr.mxu0 0.0
    %516 = vmatpush1.msra.mxu0 %v489
    %517 = vmatprep.subr.mxu0 0.0
    %518 = vmatpush1.msra.mxu0 %v490
    %519 = vmatprep.subr.mxu0 0.0
    %520 = vmatpush1.msra.mxu0 %v491
    %521 = vmatprep.subr.mxu0 0.0
    %522 = vmatpush1.msra.mxu0 %v492
    %523 = vmatprep.subr.mxu0 0.0
    %524 = vmatpush1.msra.mxu0 %v493
    %525 = vmatprep.subr.mxu0 0.0
    %526 = vmatpush1.msra.mxu0 %v494
    %527 = vmatprep.subr.mxu0 0.0
    %528 = vmatpush1.msra.mxu0 0.0
    %529 = vmatprep.subr.mxu0 0.0
    %530 = vmatpush1.msra.mxu0 0.0
    %531 = vmatprep.subr.mxu0 0.0
    %532 = vmatpush1.msra.mxu0 0.0
    %533 = vmatprep.subr.mxu0 0.0
    %534 = vmatpush1.msra.mxu0 0.0
    %535 = vmatprep.subr.mxu0 0.0
    %536 = vmatpush1.msra.mxu0 0.0
    %537 = vmatprep.subr.mxu0 0.0
    %538 = vmatpush1.msra.mxu0 0.0
    %539 = vmatprep.subr.mxu0 0.0
    %540 = vmatpush1.msra.mxu0 0.0
    %541 = vmatprep.subr.mxu0 0.0
    %542 = vmatpush1.msra.mxu0 0.0
    %543 = vmatprep.subr.mxu0 0.0
    %544 = vmatpush1.msra.mxu0 0.0
    %545 = vmatprep.subr.mxu0 0.0
    %546 = vmatpush1.msra.mxu0 0.0
    %547 = vmatprep.subr.mxu0 0.0
    %548 = vmatpush1.msra.mxu0 0.0
    %549 = vmatprep.subr.mxu0 0.0
    %550 = vmatpush1.msra.mxu0 0.0
    %551 = vmatprep.subr.mxu0 0.0
    %552 = vmatpush1.msra.mxu0 0.0
    %553 = vmatprep.subr.mxu0 0.0
    %554 = vmatpush1.msra.mxu0 0.0
    %555 = vmatprep.subr.mxu0 0.0
    %556 = vmatpush1.msra.mxu0 0.0
    %557 = vmatprep.subr.mxu0 0.0
    %558 = vmatpush1.msra.mxu0 0.0
    %559 = vmatprep.mubr.f32.mxu0 0.0
    %560 = vmatmul.mubr.f32.gmra.mrb[0].mxu0 %v463
    %v561 = vpop.f32.mrb[0].mxu0
    %v562 = vadd.f32 0.0, %v561
    %v563 = vpop.f32.mrb[0].mxu0
    %564 = vmatprep.mubr.f32.mxu0 0.0
    %565 = vmatmul.mubr.f32.gmra.mrb[0].mxu0 %v464
    %v566 = vpop.f32.mrb[0].mxu0
    %v567 = vadd.f32 0.0, %v566
    %v568 = vpop.f32.mrb[0].mxu0
    %569 = vmatprep.mubr.f32.mxu0 0.0
    %570 = vmatmul.mubr.f32.gmra.mrb[0].mxu0 %v465
    %v571 = vpop.f32.mrb[0].mxu0
    %v572 = vadd.f32 0.0, %v571
    %v573 = vpop.f32.mrb[0].mxu0
    %574 = vmatprep.mubr.f32.mxu0 0.0
    %575 = vmatmul.mubr.f32.gmra.mrb[0].mxu0 %v466
    %v576 = vpop.f32.mrb[0].mxu0
    %v577 = vadd.f32 0.0, %v576
    %v578 = vpop.f32.mrb[0].mxu0
    %579 = vmatprep.mubr.f32.mxu0 0.0
    %580 = vmatmul.mubr.f32.gmra.mrb[0].mxu0 %v467
    %v581 = vpop.f32.mrb[0].mxu0
    %v582 = vadd.f32 0.0, %v581
    %v583 = vpop.f32.mrb[0].mxu0
    %584 = vmatprep.mubr.f32.mxu0 0.0
    %585 = vmatmul.mubr.f32.gmra.mrb[0].mxu0 %v468
    %v586 = vpop.f32.mrb[0].mxu0
    %v587 = vadd.f32 0.0, %v586
    %v588 = vpop.f32.mrb[0].mxu0
    %589 = vmatprep.mubr.f32.mxu0 0.0
    %590 = vmatmul.mubr.f32.gmra.mrb[0].mxu0 %v469
    %v591 = vpop.f32.mrb[0].mxu0
    %v592 = vadd.f32 0.0, %v591
    %v593 = vpop.f32.mrb[0].mxu0
    %594 = vmatprep.mubr.f32.mxu0 0.0
    %595 = vmatmul.mubr.f32.gmra.mrb[0].mxu0 %v470
    %v596 = vpop.f32.mrb[0].mxu0
    %v597 = vadd.f32 0.0, %v596
    %v598 = vpop.f32.mrb[0].mxu0
    %599 = vmatprep.mubr.f32.mxu0 0.0
    %600 = vmatmul.mubr.f32.gmra.mrb[0].mxu0 %v471
    %v601 = vpop.f32.mrb[0].mxu0
    %v602 = vadd.f32 0.0, %v601
    %v603 = vpop.f32.mrb[0].mxu0
    %604 = vmatprep.mubr.f32.mxu0 0.0
    %605 = vmatmul.mubr.f32.gmra.mrb[0].mxu0 %v472
    %v606 = vpop.f32.mrb[0].mxu0
    %v607 = vadd.f32 0.0, %v606
    %v608 = vpop.f32.mrb[0].mxu0
    %609 = vmatprep.mubr.f32.mxu0 0.0
    %610 = vmatmul.mubr.f32.gmra.mrb[0].mxu0 %v473
    %v611 = vpop.f32.mrb[0].mxu0
    %v612 = vadd.f32 0.0, %v611
    %v613 = vpop.f32.mrb[0].mxu0
    %614 = vmatprep.mubr.f32.mxu0 0.0
    %615 = vmatmul.mubr.f32.gmra.mrb[0].mxu0 %v474
    %v616 = vpop.f32.mrb[0].mxu0
    %v617 = vadd.f32 0.0, %v616
    %v618 = vpop.f32.mrb[0].mxu0
    %619 = vmatprep.mubr.f32.mxu0 0.0
    %620 = vmatmul.mubr.f32.gmra.mrb[0].mxu0 %v475
    %v621 = vpop.f32.mrb[0].mxu0
    %v622 = vadd.f32 0.0, %v621
    %v623 = vpop.f32.mrb[0].mxu0
    %624 = vmatprep.mubr.f32.mxu0 0.0
    %625 = vmatmul.mubr.f32.gmra.mrb[0].mxu0 %v476
    %v626 = vpop.f32.mrb[0].mxu0
    %v627 = vadd.f32 0.0, %v626
    %v628 = vpop.f32.mrb[0].mxu0
    %629 = vmatprep.mubr.f32.mxu0 0.0
    %630 = vmatmul.mubr.f32.gmra.mrb[0].mxu0 %v477
    %v631 = vpop.f32.mrb[0].mxu0
    %v632 = vadd.f32 0.0, %v631
    %v633 = vpop.f32.mrb[0].mxu0
    %634 = vmatprep.mubr.f32.mxu0 0.0
    %635 = vmatmul.mubr.f32.gmra.mrb[0].mxu0 %v478
    %v636 = vpop.f32.mrb[0].mxu0
    %v637 = vadd.f32 0.0, %v636
    %v638 = vpop.f32.mrb[0].mxu0
    %639 = vdwg.mxu0
    %v640 = vld [vmem:[%s5] sm:$0x1]
    %v642 = vlaneseq
    %v643 = vshrl.u32 %v642, 7
    %v644 = vsub.s32 0, %v643
    %v645 = vrot.slane %v640, %v644
    %647 = vmatprep.subr.mxu0 0.0
    %648 = vmatpush1.msra.mxu0 %v562
    %649 = vmatprep.subr.mxu0 0.0
    %650 = vmatpush1.msra.mxu0 %v567
    %651 = vmatprep.subr.mxu0 0.0
    %652 = vmatpush1.msra.mxu0 %v572
    %653 = vmatprep.subr.mxu0 0.0
    %654 = vmatpush1.msra.mxu0 %v577
    %655 = vmatprep.subr.mxu0 0.0
    %656 = vmatpush1.msra.mxu0 %v582
    %657 = vmatprep.subr.mxu0 0.0
    %658 = vmatpush1.msra.mxu0 %v587
    %659 = vmatprep.subr.mxu0 0.0
    %660 = vmatpush1.msra.mxu0 %v592
    %661 = vmatprep.subr.mxu0 0.0
    %662 = vmatpush1.msra.mxu0 %v597
    %663 = vmatprep.subr.mxu0 0.0
    %664 = vmatpush1.msra.mxu0 %v602
    %665 = vmatprep.subr.mxu0 0.0
    %666 = vmatpush1.msra.mxu0 %v607
    %667 = vmatprep.subr.mxu0 0.0
    %668 = vmatpush1.msra.mxu0 %v612
    %669 = vmatprep.subr.mxu0 0.0
    %670 = vmatpush1.msra.mxu0 %v617
    %671 = vmatprep.subr.mxu0 0.0
    %672 = vmatpush1.msra.mxu0 %v622
    %673 = vmatprep.subr.mxu0 0.0
    %674 = vmatpush1.msra.mxu0 %v627
    %675 = vmatprep.subr.mxu0 0.0
    %676 = vmatpush1.msra.mxu0 %v632
    %677 = vmatprep.subr.mxu0 0.0
    %678 = vmatpush1.msra.mxu0 %v637
    %679 = vmatprep.subr.mxu0 0.0
    %680 = vmatpush1.msra.mxu0 0.0
    %681 = vmatprep.subr.mxu0 0.0
    %682 = vmatpush1.msra.mxu0 0.0
    %683 = vmatprep.subr.mxu0 0.0
    %684 = vmatpush1.msra.mxu0 0.0
    %685 = vmatprep.subr.mxu0 0.0
    %686 = vmatpush1.msra.mxu0 0.0
    %687 = vmatprep.subr.mxu0 0.0
    %688 = vmatpush1.msra.mxu0 0.0
    %689 = vmatprep.subr.mxu0 0.0
    %690 = vmatpush1.msra.mxu0 0.0
    %691 = vmatprep.subr.mxu0 0.0
    %692 = vmatpush1.msra.mxu0 0.0
    %693 = vmatprep.subr.mxu0 0.0
    %694 = vmatpush1.msra.mxu0 0.0
    %695 = vmatprep.subr.mxu0 0.0
    %696 = vmatpush1.msra.mxu0 0.0
    %697 = vmatprep.subr.mxu0 0.0
    %698 = vmatpush1.msra.mxu0 0.0
    %699 = vmatprep.subr.mxu0 0.0
    %700 = vmatpush1.msra.mxu0 0.0
    %701 = vmatprep.subr.mxu0 0.0
    %702 = vmatpush1.msra.mxu0 0.0
    %703 = vmatprep.subr.mxu0 0.0
    %704 = vmatpush1.msra.mxu0 0.0
    %705 = vmatprep.subr.mxu0 0.0
    %706 = vmatpush1.msra.mxu0 0.0
    %707 = vmatprep.subr.mxu0 0.0
    %708 = vmatpush1.msra.mxu0 0.0
    %709 = vmatprep.subr.mxu0 0.0
    %710 = vmatpush1.msra.mxu0 0.0
    %711 = vmatprep.mubr.f32.mxu0 0.0
    %712 = vmatmul.mubr.f32.gmra.mrb[0].mxu0 %v118
    %v713 = vpop.f32.mrb[0].mxu0
    %v714 = vadd.f32 %v645, %v713
    %v715 = vpop.f32.mrb[0].mxu0
    %716 = vmatprep.mubr.f32.mxu0 0.0
    %717 = vmatmul.mubr.f32.gmra.mrb[0].mxu0 %v119
    %v718 = vpop.f32.mrb[0].mxu0
    %v719 = vadd.f32 %v645, %v718
    %v720 = vpop.f32.mrb[0].mxu0
    %721 = vmatprep.mubr.f32.mxu0 0.0
    %722 = vmatmul.mubr.f32.gmra.mrb[0].mxu0 %v120
    %v723 = vpop.f32.mrb[0].mxu0
    %v724 = vadd.f32 %v645, %v723
    %v725 = vpop.f32.mrb[0].mxu0
    %726 = vmatprep.mubr.f32.mxu0 0.0
    %727 = vmatmul.mubr.f32.gmra.mrb[0].mxu0 %v121
    %v728 = vpop.f32.mrb[0].mxu0
    %v729 = vadd.f32 %v645, %v728
    %v730 = vpop.f32.mrb[0].mxu0
    %731 = vmatprep.mubr.f32.mxu0 0.0
    %732 = vmatmul.mubr.f32.gmra.mrb[0].mxu0 %v122
    %v733 = vpop.f32.mrb[0].mxu0
    %v734 = vadd.f32 %v645, %v733
    %v735 = vpop.f32.mrb[0].mxu0
    %736 = vmatprep.mubr.f32.mxu0 0.0
    %737 = vmatmul.mubr.f32.gmra.mrb[0].mxu0 %v123
    %v738 = vpop.f32.mrb[0].mxu0
    %v739 = vadd.f32 %v645, %v738
    %v740 = vpop.f32.mrb[0].mxu0
    %741 = vmatprep.mubr.f32.mxu0 0.0
    %742 = vmatmul.mubr.f32.gmra.mrb[0].mxu0 %v124
    %v743 = vpop.f32.mrb[0].mxu0
    %v744 = vadd.f32 %v645, %v743
    %v745 = vpop.f32.mrb[0].mxu0
    %746 = vmatprep.mubr.f32.mxu0 0.0
    %747 = vmatmul.mubr.f32.gmra.mrb[0].mxu0 %v125
    %v748 = vpop.f32.mrb[0].mxu0
    %v749 = vadd.f32 %v645, %v748
    %v750 = vpop.f32.mrb[0].mxu0
    %751 = vmatprep.mubr.f32.mxu0 0.0
    %752 = vmatmul.mubr.f32.gmra.mrb[0].mxu0 %v126
    %v753 = vpop.f32.mrb[0].mxu0
    %v754 = vadd.f32 %v645, %v753
    %v755 = vpop.f32.mrb[0].mxu0
    %756 = vmatprep.mubr.f32.mxu0 0.0
    %757 = vmatmul.mubr.f32.gmra.mrb[0].mxu0 %v127
    %v758 = vpop.f32.mrb[0].mxu0
    %v759 = vadd.f32 %v645, %v758
    %v760 = vpop.f32.mrb[0].mxu0
    %761 = vmatprep.mubr.f32.mxu0 0.0
    %762 = vmatmul.mubr.f32.gmra.mrb[0].mxu0 %v128
    %v763 = vpop.f32.mrb[0].mxu0
    %v764 = vadd.f32 %v645, %v763
    %v765 = vpop.f32.mrb[0].mxu0
    %766 = vmatprep.mubr.f32.mxu0 0.0
    %767 = vmatmul.mubr.f32.gmra.mrb[0].mxu0 %v129
    %v768 = vpop.f32.mrb[0].mxu0
    %v769 = vadd.f32 %v645, %v768
    %v770 = vpop.f32.mrb[0].mxu0
    %771 = vmatprep.mubr.f32.mxu0 0.0
    %772 = vmatmul.mubr.f32.gmra.mrb[0].mxu0 %v130
    %v773 = vpop.f32.mrb[0].mxu0
    %v774 = vadd.f32 %v645, %v773
    %v775 = vpop.f32.mrb[0].mxu0
    %776 = vmatprep.mubr.f32.mxu0 0.0
    %777 = vmatmul.mubr.f32.gmra.mrb[0].mxu0 %v131
    %v778 = vpop.f32.mrb[0].mxu0
    %v779 = vadd.f32 %v645, %v778
    %v780 = vpop.f32.mrb[0].mxu0
    %781 = vmatprep.mubr.f32.mxu0 0.0
    %782 = vmatmul.mubr.f32.gmra.mrb[0].mxu0 %v132
    %v783 = vpop.f32.mrb[0].mxu0
    %v784 = vadd.f32 %v645, %v783
    %v785 = vpop.f32.mrb[0].mxu0
    %786 = vmatprep.mubr.f32.mxu0 0.0
    %787 = vmatmul.mubr.f32.gmra.mrb[0].mxu0 %v133
    %v788 = vpop.f32.mrb[0].mxu0
    %v789 = vadd.f32 %v645, %v788
    %v790 = vpop.f32.mrb[0].mxu0
    %791 = vdwg.mxu0
    %v792 = vmax.f32 %v714, 0.0
    %v793 = vmax.f32 %v719, 0.0
    %v794 = vmax.f32 %v724, 0.0
    %v795 = vmax.f32 %v729, 0.0
    %v796 = vmax.f32 %v734, 0.0
    %v797 = vmax.f32 %v739, 0.0
    %v798 = vmax.f32 %v744, 0.0
    %v799 = vmax.f32 %v749, 0.0
    %v800 = vmax.f32 %v754, 0.0
    %v801 = vmax.f32 %v759, 0.0
    %v802 = vmax.f32 %v764, 0.0
    %v803 = vmax.f32 %v769, 0.0
    %v804 = vmax.f32 %v774, 0.0
    %v805 = vmax.f32 %v779, 0.0
    %v806 = vmax.f32 %v784, 0.0
    %v807 = vmax.f32 %v789, 0.0
    %v808 = vld [vmem:[#allocation10] sm:$0xff]
    %v809 = vld [vmem:[#allocation10 + $0x8] sm:$0xff]
    %v810 = vld [vmem:[#allocation10 + $0x10] sm:$0xff]
    %v811 = vld [vmem:[#allocation10 + $0x18] sm:$0xff]
    %v812 = vld [vmem:[#allocation10 + $0x20] sm:$0xff]
    %v813 = vld [vmem:[#allocation10 + $0x28] sm:$0xff]
    %v814 = vld [vmem:[#allocation10 + $0x30] sm:$0xff]
    %v815 = vld [vmem:[#allocation10 + $0x38] sm:$0xff]
    %v816 = vld [vmem:[#allocation10 + $0x40] sm:$0xff]
    %v817 = vld [vmem:[#allocation10 + $0x48] sm:$0xff]
    %v818 = vld [vmem:[#allocation10 + $0x50] sm:$0xff]
    %v819 = vld [vmem:[#allocation10 + $0x58] sm:$0xff]
    %v820 = vld [vmem:[#allocation10 + $0x60] sm:$0xff]
    %v821 = vld [vmem:[#allocation10 + $0x68] sm:$0xff]
    %v822 = vld [vmem:[#allocation10 + $0x70] sm:$0xff]
    %v823 = vld [vmem:[#allocation10 + $0x78] sm:$0xff]
    %824 = vmatprep.subr.mxu0 0.0
    %825 = vmatpush1.msra.mxu0 %v808
    %826 = vmatprep.subr.mxu0 0.0
    %827 = vmatpush1.msra.mxu0 %v809
    %828 = vmatprep.subr.mxu0 0.0
    %829 = vmatpush1.msra.mxu0 %v810
    %830 = vmatprep.subr.mxu0 0.0
    %831 = vmatpush1.msra.mxu0 %v811
    %832 = vmatprep.subr.mxu0 0.0
    %833 = vmatpush1.msra.mxu0 %v812
    %834 = vmatprep.subr.mxu0 0.0
    %835 = vmatpush1.msra.mxu0 %v813
    %836 = vmatprep.subr.mxu0 0.0
    %837 = vmatpush1.msra.mxu0 %v814
    %838 = vmatprep.subr.mxu0 0.0
    %839 = vmatpush1.msra.mxu0 %v815
    %840 = vmatprep.subr.mxu0 0.0
    %841 = vmatpush1.msra.mxu0 %v816
    %842 = vmatprep.subr.mxu0 0.0
    %843 = vmatpush1.msra.mxu0 %v817
    %844 = vmatprep.subr.mxu0 0.0
    %845 = vmatpush1.msra.mxu0 %v818
    %846 = vmatprep.subr.mxu0 0.0
    %847 = vmatpush1.msra.mxu0 %v819
    %848 = vmatprep.subr.mxu0 0.0
    %849 = vmatpush1.msra.mxu0 %v820
    %850 = vmatprep.subr.mxu0 0.0
    %851 = vmatpush1.msra.mxu0 %v821
    %852 = vmatprep.subr.mxu0 0.0
    %853 = vmatpush1.msra.mxu0 %v822
    %854 = vmatprep.subr.mxu0 0.0
    %855 = vmatpush1.msra.mxu0 %v823
    %856 = vmatprep.subr.mxu0 0.0
    %857 = vmatpush1.msra.mxu0 0.0
    %858 = vmatprep.subr.mxu0 0.0
    %859 = vmatpush1.msra.mxu0 0.0
    %860 = vmatprep.subr.mxu0 0.0
    %861 = vmatpush1.msra.mxu0 0.0
    %862 = vmatprep.subr.mxu0 0.0
    %863 = vmatpush1.msra.mxu0 0.0
    %864 = vmatprep.subr.mxu0 0.0
    %865 = vmatpush1.msra.mxu0 0.0
    %866 = vmatprep.subr.mxu0 0.0
    %867 = vmatpush1.msra.mxu0 0.0
    %868 = vmatprep.subr.mxu0 0.0
    %869 = vmatpush1.msra.mxu0 0.0
    %870 = vmatprep.subr.mxu0 0.0
    %871 = vmatpush1.msra.mxu0 0.0
    %872 = vmatprep.subr.mxu0 0.0
    %873 = vmatpush1.msra.mxu0 0.0
    %874 = vmatprep.subr.mxu0 0.0
    %875 = vmatpush1.msra.mxu0 0.0
    %876 = vmatprep.subr.mxu0 0.0
    %877 = vmatpush1.msra.mxu0 0.0
    %878 = vmatprep.subr.mxu0 0.0
    %879 = vmatpush1.msra.mxu0 0.0
    %880 = vmatprep.subr.mxu0 0.0
    %881 = vmatpush1.msra.mxu0 0.0
    %882 = vmatprep.subr.mxu0 0.0
    %883 = vmatpush1.msra.mxu0 0.0
    %884 = vmatprep.subr.mxu0 0.0
    %885 = vmatpush1.msra.mxu0 0.0
    %886 = vmatprep.subr.mxu0 0.0
    %887 = vmatpush1.msra.mxu0 0.0
    %888 = vmatprep.mubr.f32.mxu0 0.0
    %889 = vmatmul.mubr.f32.gmra.mrb[0].mxu0 %v792
    %v890 = vpop.f32.mrb[0].mxu0
    %v891 = vadd.f32 0.0, %v890
    %v892 = vpop.f32.mrb[0].mxu0
    %893 = vmatprep.mubr.f32.mxu0 0.0
    %894 = vmatmul.mubr.f32.gmra.mrb[0].mxu0 %v793
    %v895 = vpop.f32.mrb[0].mxu0
    %v896 = vadd.f32 0.0, %v895
    %v897 = vpop.f32.mrb[0].mxu0
    %898 = vmatprep.mubr.f32.mxu0 0.0
    %899 = vmatmul.mubr.f32.gmra.mrb[0].mxu0 %v794
    %v900 = vpop.f32.mrb[0].mxu0
    %v901 = vadd.f32 0.0, %v900
    %v902 = vpop.f32.mrb[0].mxu0
    %903 = vmatprep.mubr.f32.mxu0 0.0
    %904 = vmatmul.mubr.f32.gmra.mrb[0].mxu0 %v795
    %v905 = vpop.f32.mrb[0].mxu0
    %v906 = vadd.f32 0.0, %v905
    %v907 = vpop.f32.mrb[0].mxu0
    %908 = vmatprep.mubr.f32.mxu0 0.0
    %909 = vmatmul.mubr.f32.gmra.mrb[0].mxu0 %v796
    %v910 = vpop.f32.mrb[0].mxu0
    %v911 = vadd.f32 0.0, %v910
    %v912 = vpop.f32.mrb[0].mxu0
    %913 = vmatprep.mubr.f32.mxu0 0.0
    %914 = vmatmul.mubr.f32.gmra.mrb[0].mxu0 %v797
    %v915 = vpop.f32.mrb[0].mxu0
    %v916 = vadd.f32 0.0, %v915
    %v917 = vpop.f32.mrb[0].mxu0
    %918 = vmatprep.mubr.f32.mxu0 0.0
    %919 = vmatmul.mubr.f32.gmra.mrb[0].mxu0 %v798
    %v920 = vpop.f32.mrb[0].mxu0
    %v921 = vadd.f32 0.0, %v920
    %v922 = vpop.f32.mrb[0].mxu0
    %923 = vmatprep.mubr.f32.mxu0 0.0
    %924 = vmatmul.mubr.f32.gmra.mrb[0].mxu0 %v799
    %v925 = vpop.f32.mrb[0].mxu0
    %v926 = vadd.f32 0.0, %v925
    %v927 = vpop.f32.mrb[0].mxu0
    %928 = vmatprep.mubr.f32.mxu0 0.0
    %929 = vmatmul.mubr.f32.gmra.mrb[0].mxu0 %v800
    %v930 = vpop.f32.mrb[0].mxu0
    %v931 = vadd.f32 0.0, %v930
    %v932 = vpop.f32.mrb[0].mxu0
    %933 = vmatprep.mubr.f32.mxu0 0.0
    %934 = vmatmul.mubr.f32.gmra.mrb[0].mxu0 %v801
    %v935 = vpop.f32.mrb[0].mxu0
    %v936 = vadd.f32 0.0, %v935
    %v937 = vpop.f32.mrb[0].mxu0
    %938 = vmatprep.mubr.f32.mxu0 0.0
    %939 = vmatmul.mubr.f32.gmra.mrb[0].mxu0 %v802
    %v940 = vpop.f32.mrb[0].mxu0
    %v941 = vadd.f32 0.0, %v940
    %v942 = vpop.f32.mrb[0].mxu0
    %943 = vmatprep.mubr.f32.mxu0 0.0
    %944 = vmatmul.mubr.f32.gmra.mrb[0].mxu0 %v803
    %v945 = vpop.f32.mrb[0].mxu0
    %v946 = vadd.f32 0.0, %v945
    %v947 = vpop.f32.mrb[0].mxu0
    %948 = vmatprep.mubr.f32.mxu0 0.0
    %949 = vmatmul.mubr.f32.gmra.mrb[0].mxu0 %v804
    %v950 = vpop.f32.mrb[0].mxu0
    %v951 = vadd.f32 0.0, %v950
    %v952 = vpop.f32.mrb[0].mxu0
    %953 = vmatprep.mubr.f32.mxu0 0.0
    %954 = vmatmul.mubr.f32.gmra.mrb[0].mxu0 %v805
    %v955 = vpop.f32.mrb[0].mxu0
    %v956 = vadd.f32 0.0, %v955
    %v957 = vpop.f32.mrb[0].mxu0
    %958 = vmatprep.mubr.f32.mxu0 0.0
    %959 = vmatmul.mubr.f32.gmra.mrb[0].mxu0 %v806
    %v960 = vpop.f32.mrb[0].mxu0
    %v961 = vadd.f32 0.0, %v960
    %v962 = vpop.f32.mrb[0].mxu0
    %963 = vmatprep.mubr.f32.mxu0 0.0
    %964 = vmatmul.mubr.f32.gmra.mrb[0].mxu0 %v807
    %v965 = vpop.f32.mrb[0].mxu0
    %v966 = vadd.f32 0.0, %v965
    %v967 = vpop.f32.mrb[0].mxu0
    %968 = vdwg.mxu0
    %v969 = vld [vmem:[%s7] sm:$0x1]
    %v971 = vlaneseq
    %v972 = vshrl.u32 %v971, 7
    %v973 = vsub.s32 0, %v972
    %v974 = vrot.slane %v969, %v973
    %976 = vmatprep.subr.mxu0 0.0
    %977 = vmatpush1.msra.mxu0 %v891
    %978 = vmatprep.subr.mxu0 0.0
    %979 = vmatpush1.msra.mxu0 %v896
    %980 = vmatprep.subr.mxu0 0.0
    %981 = vmatpush1.msra.mxu0 %v901
    %982 = vmatprep.subr.mxu0 0.0
    %983 = vmatpush1.msra.mxu0 %v906
    %984 = vmatprep.subr.mxu0 0.0
    %985 = vmatpush1.msra.mxu0 %v911
    %986 = vmatprep.subr.mxu0 0.0
    %987 = vmatpush1.msra.mxu0 %v916
    %988 = vmatprep.subr.mxu0 0.0
    %989 = vmatpush1.msra.mxu0 %v921
    %990 = vmatprep.subr.mxu0 0.0
    %991 = vmatpush1.msra.mxu0 %v926
    %992 = vmatprep.subr.mxu0 0.0
    %993 = vmatpush1.msra.mxu0 %v931
    %994 = vmatprep.subr.mxu0 0.0
    %995 = vmatpush1.msra.mxu0 %v936
    %996 = vmatprep.subr.mxu0 0.0
    %997 = vmatpush1.msra.mxu0 %v941
    %998 = vmatprep.subr.mxu0 0.0
    %999 = vmatpush1.msra.mxu0 %v946
    %1000 = vmatprep.subr.mxu0 0.0
    %1001 = vmatpush1.msra.mxu0 %v951
    %1002 = vmatprep.subr.mxu0 0.0
    %1003 = vmatpush1.msra.mxu0 %v956
    %1004 = vmatprep.subr.mxu0 0.0
    %1005 = vmatpush1.msra.mxu0 %v961
    %1006 = vmatprep.subr.mxu0 0.0
    %1007 = vmatpush1.msra.mxu0 %v966
    %1008 = vmatprep.subr.mxu0 0.0
    %1009 = vmatpush1.msra.mxu0 0.0
    %1010 = vmatprep.subr.mxu0 0.0
    %1011 = vmatpush1.msra.mxu0 0.0
    %1012 = vmatprep.subr.mxu0 0.0
    %1013 = vmatpush1.msra.mxu0 0.0
    %1014 = vmatprep.subr.mxu0 0.0
    %1015 = vmatpush1.msra.mxu0 0.0
    %1016 = vmatprep.subr.mxu0 0.0
    %1017 = vmatpush1.msra.mxu0 0.0
    %1018 = vmatprep.subr.mxu0 0.0
    %1019 = vmatpush1.msra.mxu0 0.0
    %1020 = vmatprep.subr.mxu0 0.0
    %1021 = vmatpush1.msra.mxu0 0.0
    %1022 = vmatprep.subr.mxu0 0.0
    %1023 = vmatpush1.msra.mxu0 0.0
    %1024 = vmatprep.subr.mxu0 0.0
    %1025 = vmatpush1.msra.mxu0 0.0
    %1026 = vmatprep.subr.mxu0 0.0
    %1027 = vmatpush1.msra.mxu0 0.0
    %1028 = vmatprep.subr.mxu0 0.0
    %1029 = vmatpush1.msra.mxu0 0.0
    %1030 = vmatprep.subr.mxu0 0.0
    %1031 = vmatpush1.msra.mxu0 0.0
    %1032 = vmatprep.subr.mxu0 0.0
    %1033 = vmatpush1.msra.mxu0 0.0
    %1034 = vmatprep.subr.mxu0 0.0
    %1035 = vmatpush1.msra.mxu0 0.0
    %1036 = vmatprep.subr.mxu0 0.0
    %1037 = vmatpush1.msra.mxu0 0.0
    %1038 = vmatprep.subr.mxu0 0.0
    %1039 = vmatpush1.msra.mxu0 0.0
    %1040 = vmatprep.mubr.f32.mxu0 0.0
    %1041 = vmatmul.mubr.f32.gmra.mrb[0].mxu0 %v118
    %v1042 = vpop.f32.mrb[0].mxu0
    %v1043 = vadd.f32 %v974, %v1042
    %v1044 = vpop.f32.mrb[0].mxu0
    %1045 = vmatprep.mubr.f32.mxu0 0.0
    %1046 = vmatmul.mubr.f32.gmra.mrb[0].mxu0 %v119
    %v1047 = vpop.f32.mrb[0].mxu0
    %v1048 = vadd.f32 %v974, %v1047
    %v1049 = vpop.f32.mrb[0].mxu0
    %1050 = vmatprep.mubr.f32.mxu0 0.0
    %1051 = vmatmul.mubr.f32.gmra.mrb[0].mxu0 %v120
    %v1052 = vpop.f32.mrb[0].mxu0
    %v1053 = vadd.f32 %v974, %v1052
    %v1054 = vpop.f32.mrb[0].mxu0
    %1055 = vmatprep.mubr.f32.mxu0 0.0
    %1056 = vmatmul.mubr.f32.gmra.mrb[0].mxu0 %v121
    %v1057 = vpop.f32.mrb[0].mxu0
    %v1058 = vadd.f32 %v974, %v1057
    %v1059 = vpop.f32.mrb[0].mxu0
    %1060 = vmatprep.mubr.f32.mxu0 0.0
    %1061 = vmatmul.mubr.f32.gmra.mrb[0].mxu0 %v122
    %v1062 = vpop.f32.mrb[0].mxu0
    %v1063 = vadd.f32 %v974, %v1062
    %v1064 = vpop.f32.mrb[0].mxu0
    %1065 = vmatprep.mubr.f32.mxu0 0.0
    %1066 = vmatmul.mubr.f32.gmra.mrb[0].mxu0 %v123
    %v1067 = vpop.f32.mrb[0].mxu0
    %v1068 = vadd.f32 %v974, %v1067
    %v1069 = vpop.f32.mrb[0].mxu0
    %1070 = vmatprep.mubr.f32.mxu0 0.0
    %1071 = vmatmul.mubr.f32.gmra.mrb[0].mxu0 %v124
    %v1072 = vpop.f32.mrb[0].mxu0
    %v1073 = vadd.f32 %v974, %v1072
    %v1074 = vpop.f32.mrb[0].mxu0
    %1075 = vmatprep.mubr.f32.mxu0 0.0
    %1076 = vmatmul.mubr.f32.gmra.mrb[0].mxu0 %v125
    %v1077 = vpop.f32.mrb[0].mxu0
    %v1078 = vadd.f32 %v974, %v1077
    %v1079 = vpop.f32.mrb[0].mxu0
    %1080 = vmatprep.mubr.f32.mxu0 0.0
    %1081 = vmatmul.mubr.f32.gmra.mrb[0].mxu0 %v126
    %v1082 = vpop.f32.mrb[0].mxu0
    %v1083 = vadd.f32 %v974, %v1082
    %v1084 = vpop.f32.mrb[0].mxu0
    %1085 = vmatprep.mubr.f32.mxu0 0.0
    %1086 = vmatmul.mubr.f32.gmra.mrb[0].mxu0 %v127
    %v1087 = vpop.f32.mrb[0].mxu0
    %v1088 = vadd.f32 %v974, %v1087
    %v1089 = vpop.f32.mrb[0].mxu0
    %1090 = vmatprep.mubr.f32.mxu0 0.0
    %1091 = vmatmul.mubr.f32.gmra.mrb[0].mxu0 %v128
    %v1092 = vpop.f32.mrb[0].mxu0
    %v1093 = vadd.f32 %v974, %v1092
    %v1094 = vpop.f32.mrb[0].mxu0
    %1095 = vmatprep.mubr.f32.mxu0 0.0
    %1096 = vmatmul.mubr.f32.gmra.mrb[0].mxu0 %v129
    %v1097 = vpop.f32.mrb[0].mxu0
    %v1098 = vadd.f32 %v974, %v1097
    %v1099 = vpop.f32.mrb[0].mxu0
    %1100 = vmatprep.mubr.f32.mxu0 0.0
    %1101 = vmatmul.mubr.f32.gmra.mrb[0].mxu0 %v130
    %v1102 = vpop.f32.mrb[0].mxu0
    %v1103 = vadd.f32 %v974, %v1102
    %v1104 = vpop.f32.mrb[0].mxu0
    %1105 = vmatprep.mubr.f32.mxu0 0.0
    %1106 = vmatmul.mubr.f32.gmra.mrb[0].mxu0 %v131
    %v1107 = vpop.f32.mrb[0].mxu0
    %v1108 = vadd.f32 %v974, %v1107
    %v1109 = vpop.f32.mrb[0].mxu0
    %1110 = vmatprep.mubr.f32.mxu0 0.0
    %1111 = vmatmul.mubr.f32.gmra.mrb[0].mxu0 %v132
    %v1112 = vpop.f32.mrb[0].mxu0
    %v1113 = vadd.f32 %v974, %v1112
    %v1114 = vpop.f32.mrb[0].mxu0
    %1115 = vmatprep.mubr.f32.mxu0 0.0
    %1116 = vmatmul.mubr.f32.gmra.mrb[0].mxu0 %v133
    %v1117 = vpop.f32.mrb[0].mxu0
    %v1118 = vadd.f32 %v974, %v1117
    %v1119 = vpop.f32.mrb[0].mxu0
    %1120 = vdwg.mxu0
    %v1121 = vmax.f32 %v1043, 0.0
    %v1122 = vmax.f32 %v1048, 0.0
    %v1123 = vmax.f32 %v1053, 0.0
    %v1124 = vmax.f32 %v1058, 0.0
    %v1125 = vmax.f32 %v1063, 0.0
    %v1126 = vmax.f32 %v1068, 0.0
    %v1127 = vmax.f32 %v1073, 0.0
    %v1128 = vmax.f32 %v1078, 0.0
    %v1129 = vmax.f32 %v1083, 0.0
    %v1130 = vmax.f32 %v1088, 0.0
    %v1131 = vmax.f32 %v1093, 0.0
    %v1132 = vmax.f32 %v1098, 0.0
    %v1133 = vmax.f32 %v1103, 0.0
    %v1134 = vmax.f32 %v1108, 0.0
    %v1135 = vmax.f32 %v1113, 0.0
    %v1136 = vmax.f32 %v1118, 0.0
    %v1137 = vld [vmem:[#allocation11] sm:$0xff]
    %v1138 = vld [vmem:[#allocation11 + $0x8] sm:$0xff]
    %v1139 = vld [vmem:[#allocation11 + $0x10] sm:$0xff]
    %v1140 = vld [vmem:[#allocation11 + $0x18] sm:$0xff]
    %v1141 = vld [vmem:[#allocation11 + $0x20] sm:$0xff]
    %v1142 = vld [vmem:[#allocation11 + $0x28] sm:$0xff]
    %v1143 = vld [vmem:[#allocation11 + $0x30] sm:$0xff]
    %v1144 = vld [vmem:[#allocation11 + $0x38] sm:$0xff]
    %v1145 = vld [vmem:[#allocation11 + $0x40] sm:$0xff]
    %v1146 = vld [vmem:[#allocation11 + $0x48] sm:$0xff]
    %v1147 = vld [vmem:[#allocation11 + $0x50] sm:$0xff]
    %v1148 = vld [vmem:[#allocation11 + $0x58] sm:$0xff]
    %v1149 = vld [vmem:[#allocation11 + $0x60] sm:$0xff]
    %v1150 = vld [vmem:[#allocation11 + $0x68] sm:$0xff]
    %v1151 = vld [vmem:[#allocation11 + $0x70] sm:$0xff]
    %v1152 = vld [vmem:[#allocation11 + $0x78] sm:$0xff]
    %1153 = vmatprep.subr.mxu0 0.0
    %1154 = vmatpush1.msra.mxu0 %v1137
    %1155 = vmatprep.subr.mxu0 0.0
    %1156 = vmatpush1.msra.mxu0 %v1138
    %1157 = vmatprep.subr.mxu0 0.0
    %1158 = vmatpush1.msra.mxu0 %v1139
    %1159 = vmatprep.subr.mxu0 0.0
    %1160 = vmatpush1.msra.mxu0 %v1140
    %1161 = vmatprep.subr.mxu0 0.0
    %1162 = vmatpush1.msra.mxu0 %v1141
    %1163 = vmatprep.subr.mxu0 0.0
    %1164 = vmatpush1.msra.mxu0 %v1142
    %1165 = vmatprep.subr.mxu0 0.0
    %1166 = vmatpush1.msra.mxu0 %v1143
    %1167 = vmatprep.subr.mxu0 0.0
    %1168 = vmatpush1.msra.mxu0 %v1144
    %1169 = vmatprep.subr.mxu0 0.0
    %1170 = vmatpush1.msra.mxu0 %v1145
    %1171 = vmatprep.subr.mxu0 0.0
    %1172 = vmatpush1.msra.mxu0 %v1146
    %1173 = vmatprep.subr.mxu0 0.0
    %1174 = vmatpush1.msra.mxu0 %v1147
    %1175 = vmatprep.subr.mxu0 0.0
    %1176 = vmatpush1.msra.mxu0 %v1148
    %1177 = vmatprep.subr.mxu0 0.0
    %1178 = vmatpush1.msra.mxu0 %v1149
    %1179 = vmatprep.subr.mxu0 0.0
    %1180 = vmatpush1.msra.mxu0 %v1150
    %1181 = vmatprep.subr.mxu0 0.0
    %1182 = vmatpush1.msra.mxu0 %v1151
    %1183 = vmatprep.subr.mxu0 0.0
    %1184 = vmatpush1.msra.mxu0 %v1152
    %1185 = vmatprep.subr.mxu0 0.0
    %1186 = vmatpush1.msra.mxu0 0.0
    %1187 = vmatprep.subr.mxu0 0.0
    %1188 = vmatpush1.msra.mxu0 0.0
    %1189 = vmatprep.subr.mxu0 0.0
    %1190 = vmatpush1.msra.mxu0 0.0
    %1191 = vmatprep.subr.mxu0 0.0
    %1192 = vmatpush1.msra.mxu0 0.0
    %1193 = vmatprep.subr.mxu0 0.0
    %1194 = vmatpush1.msra.mxu0 0.0
    %1195 = vmatprep.subr.mxu0 0.0
    %1196 = vmatpush1.msra.mxu0 0.0
    %1197 = vmatprep.subr.mxu0 0.0
    %1198 = vmatpush1.msra.mxu0 0.0
    %1199 = vmatprep.subr.mxu0 0.0
    %1200 = vmatpush1.msra.mxu0 0.0
    %1201 = vmatprep.subr.mxu0 0.0
    %1202 = vmatpush1.msra.mxu0 0.0
    %1203 = vmatprep.subr.mxu0 0.0
    %1204 = vmatpush1.msra.mxu0 0.0
    %1205 = vmatprep.subr.mxu0 0.0
    %1206 = vmatpush1.msra.mxu0 0.0
    %1207 = vmatprep.subr.mxu0 0.0
    %1208 = vmatpush1.msra.mxu0 0.0
    %1209 = vmatprep.subr.mxu0 0.0
    %1210 = vmatpush1.msra.mxu0 0.0
    %1211 = vmatprep.subr.mxu0 0.0
    %1212 = vmatpush1.msra.mxu0 0.0
    %1213 = vmatprep.subr.mxu0 0.0
    %1214 = vmatpush1.msra.mxu0 0.0
    %1215 = vmatprep.subr.mxu0 0.0
    %1216 = vmatpush1.msra.mxu0 0.0
    %1217 = vmatprep.mubr.f32.mxu0 0.0
    %1218 = vmatmul.mubr.f32.gmra.mrb[0].mxu0 %v1121
    %v1219 = vpop.f32.mrb[0].mxu0
    %v1220 = vadd.f32 0.0, %v1219
    %v1221 = vpop.f32.mrb[0].mxu0
    %1222 = vmatprep.mubr.f32.mxu0 0.0
    %1223 = vmatmul.mubr.f32.gmra.mrb[0].mxu0 %v1122
    %v1224 = vpop.f32.mrb[0].mxu0
    %v1225 = vadd.f32 0.0, %v1224
    %v1226 = vpop.f32.mrb[0].mxu0
    %1227 = vmatprep.mubr.f32.mxu0 0.0
    %1228 = vmatmul.mubr.f32.gmra.mrb[0].mxu0 %v1123
    %v1229 = vpop.f32.mrb[0].mxu0
    %v1230 = vadd.f32 0.0, %v1229
    %v1231 = vpop.f32.mrb[0].mxu0
    %1232 = vmatprep.mubr.f32.mxu0 0.0
    %1233 = vmatmul.mubr.f32.gmra.mrb[0].mxu0 %v1124
    %v1234 = vpop.f32.mrb[0].mxu0
    %v1235 = vadd.f32 0.0, %v1234
    %v1236 = vpop.f32.mrb[0].mxu0
    %1237 = vmatprep.mubr.f32.mxu0 0.0
    %1238 = vmatmul.mubr.f32.gmra.mrb[0].mxu0 %v1125
    %v1239 = vpop.f32.mrb[0].mxu0
    %v1240 = vadd.f32 0.0, %v1239
    %v1241 = vpop.f32.mrb[0].mxu0
    %1242 = vmatprep.mubr.f32.mxu0 0.0
    %1243 = vmatmul.mubr.f32.gmra.mrb[0].mxu0 %v1126
    %v1244 = vpop.f32.mrb[0].mxu0
    %v1245 = vadd.f32 0.0, %v1244
    %v1246 = vpop.f32.mrb[0].mxu0
    %1247 = vmatprep.mubr.f32.mxu0 0.0
    %1248 = vmatmul.mubr.f32.gmra.mrb[0].mxu0 %v1127
    %v1249 = vpop.f32.mrb[0].mxu0
    %v1250 = vadd.f32 0.0, %v1249
    %v1251 = vpop.f32.mrb[0].mxu0
    %1252 = vmatprep.mubr.f32.mxu0 0.0
    %1253 = vmatmul.mubr.f32.gmra.mrb[0].mxu0 %v1128
    %v1254 = vpop.f32.mrb[0].mxu0
    %v1255 = vadd.f32 0.0, %v1254
    %v1256 = vpop.f32.mrb[0].mxu0
    %1257 = vmatprep.mubr.f32.mxu0 0.0
    %1258 = vmatmul.mubr.f32.gmra.mrb[0].mxu0 %v1129
    %v1259 = vpop.f32.mrb[0].mxu0
    %v1260 = vadd.f32 0.0, %v1259
    %v1261 = vpop.f32.mrb[0].mxu0
    %1262 = vmatprep.mubr.f32.mxu0 0.0
    %1263 = vmatmul.mubr.f32.gmra.mrb[0].mxu0 %v1130
    %v1264 = vpop.f32.mrb[0].mxu0
    %v1265 = vadd.f32 0.0, %v1264
    %v1266 = vpop.f32.mrb[0].mxu0
    %1267 = vmatprep.mubr.f32.mxu0 0.0
    %1268 = vmatmul.mubr.f32.gmra.mrb[0].mxu0 %v1131
    %v1269 = vpop.f32.mrb[0].mxu0
    %v1270 = vadd.f32 0.0, %v1269
    %v1271 = vpop.f32.mrb[0].mxu0
    %1272 = vmatprep.mubr.f32.mxu0 0.0
    %1273 = vmatmul.mubr.f32.gmra.mrb[0].mxu0 %v1132
    %v1274 = vpop.f32.mrb[0].mxu0
    %v1275 = vadd.f32 0.0, %v1274
    %v1276 = vpop.f32.mrb[0].mxu0
    %1277 = vmatprep.mubr.f32.mxu0 0.0
    %1278 = vmatmul.mubr.f32.gmra.mrb[0].mxu0 %v1133
    %v1279 = vpop.f32.mrb[0].mxu0
    %v1280 = vadd.f32 0.0, %v1279
    %v1281 = vpop.f32.mrb[0].mxu0
    %1282 = vmatprep.mubr.f32.mxu0 0.0
    %1283 = vmatmul.mubr.f32.gmra.mrb[0].mxu0 %v1134
    %v1284 = vpop.f32.mrb[0].mxu0
    %v1285 = vadd.f32 0.0, %v1284
    %v1286 = vpop.f32.mrb[0].mxu0
    %1287 = vmatprep.mubr.f32.mxu0 0.0
    %1288 = vmatmul.mubr.f32.gmra.mrb[0].mxu0 %v1135
    %v1289 = vpop.f32.mrb[0].mxu0
    %v1290 = vadd.f32 0.0, %v1289
    %v1291 = vpop.f32.mrb[0].mxu0
    %1292 = vmatprep.mubr.f32.mxu0 0.0
    %1293 = vmatmul.mubr.f32.gmra.mrb[0].mxu0 %v1136
    %v1294 = vpop.f32.mrb[0].mxu0
    %v1295 = vadd.f32 0.0, %v1294
    %v1296 = vpop.f32.mrb[0].mxu0
    %1297 = vdwg.mxu0
    %v1298 = vld [vmem:[%s9] sm:$0x1]
    %v1300 = vlaneseq
    %v1301 = vshrl.u32 %v1300, 7
    %v1302 = vsub.s32 0, %v1301
    %v1303 = vrot.slane %v1298, %v1302
    %1305 = vmatprep.subr.mxu0 0.0
    %1306 = vmatpush1.msra.mxu0 %v1220
    %1307 = vmatprep.subr.mxu0 0.0
    %1308 = vmatpush1.msra.mxu0 %v1225
    %1309 = vmatprep.subr.mxu0 0.0
    %1310 = vmatpush1.msra.mxu0 %v1230
    %1311 = vmatprep.subr.mxu0 0.0
    %1312 = vmatpush1.msra.mxu0 %v1235
    %1313 = vmatprep.subr.mxu0 0.0
    %1314 = vmatpush1.msra.mxu0 %v1240
    %1315 = vmatprep.subr.mxu0 0.0
    %1316 = vmatpush1.msra.mxu0 %v1245
    %1317 = vmatprep.subr.mxu0 0.0
    %1318 = vmatpush1.msra.mxu0 %v1250
    %1319 = vmatprep.subr.mxu0 0.0
    %1320 = vmatpush1.msra.mxu0 %v1255
    %1321 = vmatprep.subr.mxu0 0.0
    %1322 = vmatpush1.msra.mxu0 %v1260
    %1323 = vmatprep.subr.mxu0 0.0
    %1324 = vmatpush1.msra.mxu0 %v1265
    %1325 = vmatprep.subr.mxu0 0.0
    %1326 = vmatpush1.msra.mxu0 %v1270
    %1327 = vmatprep.subr.mxu0 0.0
    %1328 = vmatpush1.msra.mxu0 %v1275
    %1329 = vmatprep.subr.mxu0 0.0
    %1330 = vmatpush1.msra.mxu0 %v1280
    %1331 = vmatprep.subr.mxu0 0.0
    %1332 = vmatpush1.msra.mxu0 %v1285
    %1333 = vmatprep.subr.mxu0 0.0
    %1334 = vmatpush1.msra.mxu0 %v1290
    %1335 = vmatprep.subr.mxu0 0.0
    %1336 = vmatpush1.msra.mxu0 %v1295
    %1337 = vmatprep.subr.mxu0 0.0
    %1338 = vmatpush1.msra.mxu0 0.0
    %1339 = vmatprep.subr.mxu0 0.0
    %1340 = vmatpush1.msra.mxu0 0.0
    %1341 = vmatprep.subr.mxu0 0.0
    %1342 = vmatpush1.msra.mxu0 0.0
    %1343 = vmatprep.subr.mxu0 0.0
    %1344 = vmatpush1.msra.mxu0 0.0
    %1345 = vmatprep.subr.mxu0 0.0
    %1346 = vmatpush1.msra.mxu0 0.0
    %1347 = vmatprep.subr.mxu0 0.0
    %1348 = vmatpush1.msra.mxu0 0.0
    %1349 = vmatprep.subr.mxu0 0.0
    %1350 = vmatpush1.msra.mxu0 0.0
    %1351 = vmatprep.subr.mxu0 0.0
    %1352 = vmatpush1.msra.mxu0 0.0
    %1353 = vmatprep.subr.mxu0 0.0
    %1354 = vmatpush1.msra.mxu0 0.0
    %1355 = vmatprep.subr.mxu0 0.0
    %1356 = vmatpush1.msra.mxu0 0.0
    %1357 = vmatprep.subr.mxu0 0.0
    %1358 = vmatpush1.msra.mxu0 0.0
    %1359 = vmatprep.subr.mxu0 0.0
    %1360 = vmatpush1.msra.mxu0 0.0
    %1361 = vmatprep.subr.mxu0 0.0
    %1362 = vmatpush1.msra.mxu0 0.0
    %1363 = vmatprep.subr.mxu0 0.0
    %1364 = vmatpush1.msra.mxu0 0.0
    %1365 = vmatprep.subr.mxu0 0.0
    %1366 = vmatpush1.msra.mxu0 0.0
    %1367 = vmatprep.subr.mxu0 0.0
    %1368 = vmatpush1.msra.mxu0 0.0
    %1369 = vmatprep.mubr.f32.mxu0 0.0
    %1370 = vmatmul.mubr.f32.gmra.mrb[0].mxu0 %v118
    %v1371 = vpop.f32.mrb[0].mxu0
    %v1372 = vadd.f32 %v1303, %v1371
    %v1373 = vpop.f32.mrb[0].mxu0
    %1374 = vmatprep.mubr.f32.mxu0 0.0
    %1375 = vmatmul.mubr.f32.gmra.mrb[0].mxu0 %v119
    %v1376 = vpop.f32.mrb[0].mxu0
    %v1377 = vadd.f32 %v1303, %v1376
    %v1378 = vpop.f32.mrb[0].mxu0
    %1379 = vmatprep.mubr.f32.mxu0 0.0
    %1380 = vmatmul.mubr.f32.gmra.mrb[0].mxu0 %v120
    %v1381 = vpop.f32.mrb[0].mxu0
    %v1382 = vadd.f32 %v1303, %v1381
    %v1383 = vpop.f32.mrb[0].mxu0
    %1384 = vmatprep.mubr.f32.mxu0 0.0
    %1385 = vmatmul.mubr.f32.gmra.mrb[0].mxu0 %v121
    %v1386 = vpop.f32.mrb[0].mxu0
    %v1387 = vadd.f32 %v1303, %v1386
    %v1388 = vpop.f32.mrb[0].mxu0
    %1389 = vmatprep.mubr.f32.mxu0 0.0
    %1390 = vmatmul.mubr.f32.gmra.mrb[0].mxu0 %v122
    %v1391 = vpop.f32.mrb[0].mxu0
    %v1392 = vadd.f32 %v1303, %v1391
    %v1393 = vpop.f32.mrb[0].mxu0
    %1394 = vmatprep.mubr.f32.mxu0 0.0
    %1395 = vmatmul.mubr.f32.gmra.mrb[0].mxu0 %v123
    %v1396 = vpop.f32.mrb[0].mxu0
    %v1397 = vadd.f32 %v1303, %v1396
    %v1398 = vpop.f32.mrb[0].mxu0
    %1399 = vmatprep.mubr.f32.mxu0 0.0
    %1400 = vmatmul.mubr.f32.gmra.mrb[0].mxu0 %v124
    %v1401 = vpop.f32.mrb[0].mxu0
    %v1402 = vadd.f32 %v1303, %v1401
    %v1403 = vpop.f32.mrb[0].mxu0
    %1404 = vmatprep.mubr.f32.mxu0 0.0
    %1405 = vmatmul.mubr.f32.gmra.mrb[0].mxu0 %v125
    %v1406 = vpop.f32.mrb[0].mxu0
    %v1407 = vadd.f32 %v1303, %v1406
    %v1408 = vpop.f32.mrb[0].mxu0
    %1409 = vmatprep.mubr.f32.mxu0 0.0
    %1410 = vmatmul.mubr.f32.gmra.mrb[0].mxu0 %v126
    %v1411 = vpop.f32.mrb[0].mxu0
    %v1412 = vadd.f32 %v1303, %v1411
    %v1413 = vpop.f32.mrb[0].mxu0
    %1414 = vmatprep.mubr.f32.mxu0 0.0
    %1415 = vmatmul.mubr.f32.gmra.mrb[0].mxu0 %v127
    %v1416 = vpop.f32.mrb[0].mxu0
    %v1417 = vadd.f32 %v1303, %v1416
    %v1418 = vpop.f32.mrb[0].mxu0
    %1419 = vmatprep.mubr.f32.mxu0 0.0
    %1420 = vmatmul.mubr.f32.gmra.mrb[0].mxu0 %v128
    %v1421 = vpop.f32.mrb[0].mxu0
    %v1422 = vadd.f32 %v1303, %v1421
    %v1423 = vpop.f32.mrb[0].mxu0
    %1424 = vmatprep.mubr.f32.mxu0 0.0
    %1425 = vmatmul.mubr.f32.gmra.mrb[0].mxu0 %v129
    %v1426 = vpop.f32.mrb[0].mxu0
    %v1427 = vadd.f32 %v1303, %v1426
    %v1428 = vpop.f32.mrb[0].mxu0
    %1429 = vmatprep.mubr.f32.mxu0 0.0
    %1430 = vmatmul.mubr.f32.gmra.mrb[0].mxu0 %v130
    %v1431 = vpop.f32.mrb[0].mxu0
    %v1432 = vadd.f32 %v1303, %v1431
    %v1433 = vpop.f32.mrb[0].mxu0
    %1434 = vmatprep.mubr.f32.mxu0 0.0
    %1435 = vmatmul.mubr.f32.gmra.mrb[0].mxu0 %v131
    %v1436 = vpop.f32.mrb[0].mxu0
    %v1437 = vadd.f32 %v1303, %v1436
    %v1438 = vpop.f32.mrb[0].mxu0
    %1439 = vmatprep.mubr.f32.mxu0 0.0
    %1440 = vmatmul.mubr.f32.gmra.mrb[0].mxu0 %v132
    %v1441 = vpop.f32.mrb[0].mxu0
    %v1442 = vadd.f32 %v1303, %v1441
    %v1443 = vpop.f32.mrb[0].mxu0
    %1444 = vmatprep.mubr.f32.mxu0 0.0
    %1445 = vmatmul.mubr.f32.gmra.mrb[0].mxu0 %v133
    %v1446 = vpop.f32.mrb[0].mxu0
    %v1447 = vadd.f32 %v1303, %v1446
    %v1448 = vpop.f32.mrb[0].mxu0
    %1449 = vdwg.mxu0
    %1450 = vmax.xlane.f32.xlu0 %v1372
    %v1451 = vpop.xlane.xlu0 %1450
    %1452 = vmax.xlane.f32.xlu0 %v1377
    %v1453 = vpop.xlane.xlu0 %1452
    %1454 = vmax.xlane.f32.xlu0 %v1382
    %v1455 = vpop.xlane.xlu0 %1454
    %1456 = vmax.xlane.f32.xlu0 %v1387
    %v1457 = vpop.xlane.xlu0 %1456
    %1458 = vmax.xlane.f32.xlu0 %v1392
    %v1459 = vpop.xlane.xlu0 %1458
    %1460 = vmax.xlane.f32.xlu0 %v1397
    %v1461 = vpop.xlane.xlu0 %1460
    %1462 = vmax.xlane.f32.xlu0 %v1402
    %v1463 = vpop.xlane.xlu0 %1462
    %1464 = vmax.xlane.f32.xlu0 %v1407
    %v1465 = vpop.xlane.xlu0 %1464
    %1466 = vmax.xlane.f32.xlu0 %v1412
    %v1467 = vpop.xlane.xlu0 %1466
    %1468 = vmax.xlane.f32.xlu0 %v1417
    %v1469 = vpop.xlane.xlu0 %1468
    %1470 = vmax.xlane.f32.xlu0 %v1422
    %v1471 = vpop.xlane.xlu0 %1470
    %1472 = vmax.xlane.f32.xlu0 %v1427
    %v1473 = vpop.xlane.xlu0 %1472
    %1474 = vmax.xlane.f32.xlu0 %v1432
    %v1475 = vpop.xlane.xlu0 %1474
    %1476 = vmax.xlane.f32.xlu0 %v1437
    %v1477 = vpop.xlane.xlu0 %1476
    %1478 = vmax.xlane.f32.xlu0 %v1442
    %v1479 = vpop.xlane.xlu0 %1478
    %1480 = vmax.xlane.f32.xlu0 %v1447
    %v1481 = vpop.xlane.xlu0 %1480
    %v1482 = vsub.f32 %v1372, %v1451
    %v1483 = vsub.f32 %v1377, %v1453
    %v1484 = vsub.f32 %v1382, %v1455
    %v1485 = vsub.f32 %v1387, %v1457
    %v1486 = vsub.f32 %v1392, %v1459
    %v1487 = vsub.f32 %v1397, %v1461
    %v1488 = vsub.f32 %v1402, %v1463
    %v1489 = vsub.f32 %v1407, %v1465
    %v1490 = vsub.f32 %v1412, %v1467
    %v1491 = vsub.f32 %v1417, %v1469
    %v1492 = vsub.f32 %v1422, %v1471
    %v1493 = vsub.f32 %v1427, %v1473
    %v1494 = vsub.f32 %v1432, %v1475
    %v1495 = vsub.f32 %v1437, %v1477
    %v1496 = vsub.f32 %v1442, %v1479
    %v1497 = vsub.f32 %v1447, %v1481
    %v1498 = vmul.f32 %v1482, 1.442695
    %v1499 = vpow.pop %v1498
    %v1500 = vmul.f32 %v1483, 1.442695
    %v1501 = vpow.pop %v1500
    %v1502 = vmul.f32 %v1484, 1.442695
    %v1503 = vpow.pop %v1502
    %v1504 = vmul.f32 %v1485, 1.442695
    %v1505 = vpow.pop %v1504
    %v1506 = vmul.f32 %v1486, 1.442695
    %v1507 = vpow.pop %v1506
    %v1508 = vmul.f32 %v1487, 1.442695
    %v1509 = vpow.pop %v1508
    %v1510 = vmul.f32 %v1488, 1.442695
    %v1511 = vpow.pop %v1510
    %v1512 = vmul.f32 %v1489, 1.442695
    %v1513 = vpow.pop %v1512
    %v1514 = vmul.f32 %v1490, 1.442695
    %v1515 = vpow.pop %v1514
    %v1516 = vmul.f32 %v1491, 1.442695
    %v1517 = vpow.pop %v1516
    %v1518 = vmul.f32 %v1492, 1.442695
    %v1519 = vpow.pop %v1518
    %v1520 = vmul.f32 %v1493, 1.442695
    %v1521 = vpow.pop %v1520
    %v1522 = vmul.f32 %v1494, 1.442695
    %v1523 = vpow.pop %v1522
    %v1524 = vmul.f32 %v1495, 1.442695
    %v1525 = vpow.pop %v1524
    %v1526 = vmul.f32 %v1496, 1.442695
    %v1527 = vpow.pop %v1526
    %v1528 = vmul.f32 %v1497, 1.442695
    %v1529 = vpow.pop %v1528
    %1530 = vadd.xlane.f32.xlu0 %v1499
    %v1531 = vpop.xlane.xlu0 %1530
    %1532 = vadd.xlane.f32.xlu0 %v1501
    %v1533 = vpop.xlane.xlu0 %1532
    %1534 = vadd.xlane.f32.xlu0 %v1503
    %v1535 = vpop.xlane.xlu0 %1534
    %1536 = vadd.xlane.f32.xlu0 %v1505
    %v1537 = vpop.xlane.xlu0 %1536
    %1538 = vadd.xlane.f32.xlu0 %v1507
    %v1539 = vpop.xlane.xlu0 %1538
    %1540 = vadd.xlane.f32.xlu0 %v1509
    %v1541 = vpop.xlane.xlu0 %1540
    %1542 = vadd.xlane.f32.xlu0 %v1511
    %v1543 = vpop.xlane.xlu0 %1542
    %1544 = vadd.xlane.f32.xlu0 %v1513
    %v1545 = vpop.xlane.xlu0 %1544
    %1546 = vadd.xlane.f32.xlu0 %v1515
    %v1547 = vpop.xlane.xlu0 %1546
    %1548 = vadd.xlane.f32.xlu0 %v1517
    %v1549 = vpop.xlane.xlu0 %1548
    %1550 = vadd.xlane.f32.xlu0 %v1519
    %v1551 = vpop.xlane.xlu0 %1550
    %1552 = vadd.xlane.f32.xlu0 %v1521
    %v1553 = vpop.xlane.xlu0 %1552
    %1554 = vadd.xlane.f32.xlu0 %v1523
    %v1555 = vpop.xlane.xlu0 %1554
    %1556 = vadd.xlane.f32.xlu0 %v1525
    %v1557 = vpop.xlane.xlu0 %1556
    %1558 = vadd.xlane.f32.xlu0 %v1527
    %v1559 = vpop.xlane.xlu0 %1558
    %1560 = vadd.xlane.f32.xlu0 %v1529
    %v1561 = vpop.xlane.xlu0 %1560
    %v1562 = vlog2.pop %v1531
    %v1563 = vmul.f32 %v1562, 0.6931472
    %v1564 = vlog2.pop %v1533
    %v1565 = vmul.f32 %v1564, 0.6931472
    %v1566 = vlog2.pop %v1535
    %v1567 = vmul.f32 %v1566, 0.6931472
    %v1568 = vlog2.pop %v1537
    %v1569 = vmul.f32 %v1568, 0.6931472
    %v1570 = vlog2.pop %v1539
    %v1571 = vmul.f32 %v1570, 0.6931472
    %v1572 = vlog2.pop %v1541
    %v1573 = vmul.f32 %v1572, 0.6931472
    %v1574 = vlog2.pop %v1543
    %v1575 = vmul.f32 %v1574, 0.6931472
    %v1576 = vlog2.pop %v1545
    %v1577 = vmul.f32 %v1576, 0.6931472
    %v1578 = vlog2.pop %v1547
    %v1579 = vmul.f32 %v1578, 0.6931472
    %v1580 = vlog2.pop %v1549
    %v1581 = vmul.f32 %v1580, 0.6931472
    %v1582 = vlog2.pop %v1551
    %v1583 = vmul.f32 %v1582, 0.6931472
    %v1584 = vlog2.pop %v1553
    %v1585 = vmul.f32 %v1584, 0.6931472
    %v1586 = vlog2.pop %v1555
    %v1587 = vmul.f32 %v1586, 0.6931472
    %v1588 = vlog2.pop %v1557
    %v1589 = vmul.f32 %v1588, 0.6931472
    %v1590 = vlog2.pop %v1559
    %v1591 = vmul.f32 %v1590, 0.6931472
    %v1592 = vlog2.pop %v1561
    %v1593 = vmul.f32 %v1592, 0.6931472
    %v1594 = vadd.f32 %v1451, %v1563
    %v1595 = vadd.f32 %v1453, %v1565
    %v1596 = vadd.f32 %v1455, %v1567
    %v1597 = vadd.f32 %v1457, %v1569
    %v1598 = vadd.f32 %v1459, %v1571
    %v1599 = vadd.f32 %v1461, %v1573
    %v1600 = vadd.f32 %v1463, %v1575
    %v1601 = vadd.f32 %v1465, %v1577
    %v1602 = vadd.f32 %v1467, %v1579
    %v1603 = vadd.f32 %v1469, %v1581
    %v1604 = vadd.f32 %v1471, %v1583
    %v1605 = vadd.f32 %v1473, %v1585
    %v1606 = vadd.f32 %v1475, %v1587
    %v1607 = vadd.f32 %v1477, %v1589
    %v1608 = vadd.f32 %v1479, %v1591
    %v1609 = vadd.f32 %v1481, %v1593
    %v1610 = vsub.f32 %v1372, %v1594
    %v1611 = vsub.f32 %v1377, %v1595
    %v1612 = vsub.f32 %v1382, %v1596
    %v1613 = vsub.f32 %v1387, %v1597
    %v1614 = vsub.f32 %v1392, %v1598
    %v1615 = vsub.f32 %v1397, %v1599
    %v1616 = vsub.f32 %v1402, %v1600
    %v1617 = vsub.f32 %v1407, %v1601
    %v1618 = vsub.f32 %v1412, %v1602
    %v1619 = vsub.f32 %v1417, %v1603
    %v1620 = vsub.f32 %v1422, %v1604
    %v1621 = vsub.f32 %v1427, %v1605
    %v1622 = vsub.f32 %v1432, %v1606
    %v1623 = vsub.f32 %v1437, %v1607
    %v1624 = vsub.f32 %v1442, %v1608
    %v1625 = vsub.f32 %v1447, %v1609
    %1626 = vst [vmem:[#allocation13] sm:$0xff] %v1610
    %1627 = vst [vmem:[#allocation13 + $0x8] sm:$0xff] %v1611
    %1628 = vst [vmem:[#allocation13 + $0x10] sm:$0xff] %v1612
    %1629 = vst [vmem:[#allocation13 + $0x18] sm:$0xff] %v1613
    %1630 = vst [vmem:[#allocation13 + $0x20] sm:$0xff] %v1614
    %1631 = vst [vmem:[#allocation13 + $0x28] sm:$0xff] %v1615
    %1632 = vst [vmem:[#allocation13 + $0x30] sm:$0xff] %v1616
    %1633 = vst [vmem:[#allocation13 + $0x38] sm:$0xff] %v1617
    %1634 = vst [vmem:[#allocation13 + $0x40] sm:$0xff] %v1618
    %1635 = vst [vmem:[#allocation13 + $0x48] sm:$0xff] %v1619
    %1636 = vst [vmem:[#allocation13 + $0x50] sm:$0xff] %v1620
    %1637 = vst [vmem:[#allocation13 + $0x58] sm:$0xff] %v1621
    %1638 = vst [vmem:[#allocation13 + $0x60] sm:$0xff] %v1622
    %1639 = vst [vmem:[#allocation13 + $0x68] sm:$0xff] %v1623
    %1640 = vst [vmem:[#allocation13 + $0x70] sm:$0xff] %v1624
    %1641 = vst [vmem:[#allocation13 + $0x78] sm:$0xff] %v1625
    // Predicated region
    $region66: #{tpu_custom_call.1} parent=1 // pred_check
      _
    $region67: #{tpu_custom_call.1} parent=1 // pred_check_branch
      %1643 = sbr.rel (0) target = $region69
    $region68: #{tpu_custom_call.1} parent=1 // pred_region
      %s1645 = ssub.s32 2048, 2048
      %1646 = vsyncadd [#allocation4], %s1645
      %s1647 = sshll.u32 [#allocation13], 4
      %s1648 = int_to_ptr.vmem [resolvable:$true] %s1647
      %1653 = dma.vmem_to_hbm [thread:$0]  %s1648, 2048, %s10, [#allocation4], 128, 128, 8
    $region69: #{tpu_custom_call.1} parent=1 // pred_fallthru
      _
    // Predicated region
    $region70: #{tpu_custom_call.1} parent=1 // pred_check
      _
    $region71: #{tpu_custom_call.1} parent=1 // pred_check_branch
      %1655 = sbr.rel (0) target = $region73
    $region72: #{tpu_custom_call.1} parent=1 // pred_region
      %1656 = dma.done [#allocation4], 2048
    $region73: #{tpu_custom_call.1} parent=1 // pred_fallthru
      _
    %1657 = vsyncpa [#allocation3], 1
    %1658 = vsyncpa [#allocation6], 1
    %1659 = vsyncpa [#allocation9], 1
    %1660 = vsyncpa [#allocation12], 1
    %1661 = vsyncpa [#allocation4], 1

</llo_original>
